<compile_context>
chip_gen: v7x
topology: tpu7x:2x2x1
jax: 0.10.0
libtpu: 0.0.40
codegen_flags: <defaults>
</compile_context>

<pallas_src>
import functools

import jax
import jax.numpy as jnp
from jax.experimental import pallas as pl
from jax.experimental.pallas import tpu as pltpu

# Real / padded feature dimensions.
D_IN = 32 * 32          # 1024 = 8 * 128, already lane-dense
H1, H2, N_OUT = 300, 100, 10
H1_PAD, H2_PAD, OUT_PAD = 384, 128, 128   # multiples of 128


def _round_up(x, m):
    return (x + m - 1) // m * m


def mlp_kernel(x_ref, w1_ref, b1_ref, w2_ref, b2_ref, w3_ref, b3_ref, o_ref):
    # In-kernel bf16 cast of x (VPU, hidden under MXU); HBM only sees the
    # producer's native dtype once.
    x = x_ref[...].astype(jnp.bfloat16)
    # fc1 + ReLU: bf16 operands, f32 MXU accumulation, f32 bias/ReLU.
    h1 = jnp.dot(x, w1_ref[...], preferred_element_type=jnp.float32)
    h1 = jnp.maximum(h1 + b1_ref[...], 0.0)
    # fc2 + ReLU
    h2 = jnp.dot(h1.astype(jnp.bfloat16), w2_ref[...],
                 preferred_element_type=jnp.float32)
    h2 = jnp.maximum(h2 + b2_ref[...], 0.0)
    # fc3 (no activation); padded output columns are exact zeros.
    out = jnp.dot(h2.astype(jnp.bfloat16), w3_ref[...],
                  preferred_element_type=jnp.float32)
    o_ref[...] = (out + b3_ref[...]).astype(o_ref.dtype)


def prepare_params(params):
    """Zero-pad (in, out) weights/biases to lane-dense shapes; weights -> bf16."""
    w1, b1, w2, b2, w3, b3 = params

    def pad(a, shape):
        return jnp.zeros(shape, a.dtype).at[: a.shape[0], : a.shape[1]].set(a)

    # TODO(synk): optional v5e-only lever: int8-quantize w1 (per-column scale
    # folded into the bias path) for ~1.7x on the MXU-bound v5e path.
    w1p = pad(w1, (D_IN, H1_PAD)).astype(jnp.bfloat16)
    b1p = pad(b1.reshape(1, -1), (1, H1_PAD)).astype(jnp.float32)
    w2p = pad(w2, (H1_PAD, H2_PAD)).astype(jnp.bfloat16)
    b2p = pad(b2.reshape(1, -1), (1, H2_PAD)).astype(jnp.float32)
    w3p = pad(w3, (H2_PAD, OUT_PAD)).astype(jnp.bfloat16)
    b3p = pad(b3.reshape(1, -1), (1, OUT_PAD)).astype(jnp.float32)
    return (w1p, b1p, w2p, b2p, w3p, b3p)


@functools.partial(jax.jit, static_argnames=("block_batch", "out_dtype"))
def net_forward(x, padded_params, block_batch=1024, out_dtype=jnp.bfloat16):
    """x: (B, 1024), any float dtype (f32 typical). Returns (B, 10) logits in
    out_dtype (bf16 default; use jnp.float32 if the attack loss needs it)."""
    w1, b1, w2, b2, w3, b3 = padded_params
    B = x.shape[0]

    # Batch tile: multiple of 8 sublanes.  Split B across >=2 tiles whenever
    # possible (v7x megacore sharding of the "parallel" axis), capped at
    # block_batch to bound VMEM.  Large tiles amortize the ~0.35us/step
    # grid overhead; vmem_limit_bytes below keeps v5e happy at tb=1024.
    tb = min(block_batch, max(8, _round_up(pl.cdiv(B, 2), 8)))
    b_pad = _round_up(B, tb)
    # Pad only the ragged tail; zero copies when B % tb == 0.
    x_in = x if b_pad == B else jnp.pad(x, ((0, b_pad - B), (0, 0)))

    grid = (b_pad // tb,)

    x_bytes = x_in.dtype.itemsize
    out_bytes = jnp.dtype(out_dtype).itemsize
    flops = 2 * b_pad * (D_IN * H1_PAD + H1_PAD * H2_PAD + H2_PAD * OUT_PAD)
    bytes_accessed = (
        b_pad * D_IN * x_bytes                             # x (native dtype)
        + (w1.size + w2.size + w3.size) * 2                # weights (bf16)
        + (b1.size + b2.size + b3.size) * 4                # biases (f32)
        + b_pad * OUT_PAD * out_bytes                      # output
    )

    out = pl.pallas_call(
        mlp_kernel,
        out_shape=jax.ShapeDtypeStruct((b_pad, OUT_PAD), out_dtype),
        grid=grid,
        in_specs=[
            # x tile: native dtype, cast in-kernel.  If its DMA is exposed on
            # v6e at steady state, add pipeline_mode=pl.Buffered(3) here.
            pl.BlockSpec((tb, D_IN), lambda i: (i, 0)),
            # Weights/biases: constant index_map -> VMEM-resident across the
            # grid.  (Could be single-buffered via pipeline_mode=pl.Buffered(1)
            # to trim ~0.9 MiB on v7x when pushing tb to 2048+.)
            pl.BlockSpec((D_IN, H1_PAD), lambda i: (0, 0)),    # w1
            pl.BlockSpec((1, H1_PAD), lambda i: (0, 0)),       # b1
            pl.BlockSpec((H1_PAD, H2_PAD), lambda i: (0, 0)),  # w2
            pl.BlockSpec((1, H2_PAD), lambda i: (0, 0)),       # b2
            pl.BlockSpec((H2_PAD, OUT_PAD), lambda i: (0, 0)), # w3
            pl.BlockSpec((1, OUT_PAD), lambda i: (0, 0)),      # b3
        ],
        out_specs=pl.BlockSpec((tb, OUT_PAD), lambda i: (i, 0)),
        compiler_params=pltpu.CompilerParams(
            dimension_semantics=("parallel",),
            vmem_limit_bytes=48 * 1024 * 1024,
        ),
        cost_estimate=pl.CostEstimate(
            flops=flops, bytes_accessed=bytes_accessed, transcendentals=0),
    )(x_in, w1, b1, w2, b2, w3, b3)

    # Drop batch padding and the padded logit columns.
    return out[:B, :N_OUT]


def init_params(key):
    """PyTorch-default-like Linear init (uniform +/- 1/sqrt(fan_in)).
    Weights stored as (in, out), i.e. the transpose of nn.Linear.weight."""
    dims = [(D_IN, H1), (H1, H2), (H2, N_OUT)]
    params = []
    for fan_in, fan_out in dims:
        kw, kb, key = jax.random.split(key, 3)
        bound = 1.0 / jnp.sqrt(float(fan_in))
        w = jax.random.uniform(kw, (fan_in, fan_out), jnp.float32, -bound, bound)
        b = jax.random.uniform(kb, (1, fan_out), jnp.float32, -bound, bound)
        params += [w, b]
    return params


def reference_forward(x, params):
    """f32 reference matching the PyTorch module semantics."""
    w1, b1, w2, b2, w3, b3 = params
    h1 = jnp.maximum(x @ w1 + b1, 0.0)
    h2 = jnp.maximum(h1 @ w2 + b2, 0.0)
    return h2 @ w3 + b3


if __name__ == "__main__":
    key = jax.random.PRNGKey(0)
    kx, kp = jax.random.split(key)

    # Small test batch; chosen so the ragged-tail pad AND the >=2-step grid
    # paths are both exercised (tb=8, b_pad=16, grid=(2,)).
    B = 12
    x = jax.random.normal(kx, (B, D_IN), jnp.float32)  # flattened 32x32 images
    params = init_params(kp)
    padded_params = prepare_params(params)

    out = net_forward(x, padded_params)
    out = jax.block_until_ready(out)

    ref = reference_forward(x, params)
    assert out.shape == (B, N_OUT)
    # bf16 operands / bf16 logits with f32 accumulation: small bounded error.
    err = float(jnp.max(jnp.abs(out.astype(jnp.float32) - ref)))
    assert err < 3e-2, err

    print("KERNEL_OK")
</pallas_src>

<mosaic_0001>
module attributes {stable_mosaic.version = 11 : i64} {
  func.func @mlp_kernel(%arg0: i32, %arg1: memref<8x1024xf32, #tpu.memory_space<vmem>>, %arg2: memref<1024x384xbf16, #tpu.memory_space<vmem>>, %arg3: memref<1x384xf32, #tpu.memory_space<vmem>>, %arg4: memref<384x128xbf16, #tpu.memory_space<vmem>>, %arg5: memref<1x128xf32, #tpu.memory_space<vmem>>, %arg6: memref<128x128xbf16, #tpu.memory_space<vmem>>, %arg7: memref<1x128xf32, #tpu.memory_space<vmem>>, %arg8: memref<8x128xbf16, #tpu.memory_space<vmem>>) attributes {dimension_semantics = [#tpu.dimension_semantics<parallel>], iteration_bounds = array<i64: 2>, scalar_prefetch = 0 : i64, scratch_operands = 0 : i64, tpu.core_type = #tpu.core_type<tc>, window_params = [{transform_indices = @transform_0, window_bounds = array<i64: 8, 1024>}, {pipeline_mode = #tpu.pipeline_mode<synchronous>, transform_indices = @transform_1, window_bounds = array<i64: 1024, 384>}, {pipeline_mode = #tpu.pipeline_mode<synchronous>, transform_indices = @transform_2, window_bounds = array<i64: 1, 384>}, {pipeline_mode = #tpu.pipeline_mode<synchronous>, transform_indices = @transform_3, window_bounds = array<i64: 384, 128>}, {pipeline_mode = #tpu.pipeline_mode<synchronous>, transform_indices = @transform_4, window_bounds = array<i64: 1, 128>}, {pipeline_mode = #tpu.pipeline_mode<synchronous>, transform_indices = @transform_5, window_bounds = array<i64: 128, 128>}, {pipeline_mode = #tpu.pipeline_mode<synchronous>, transform_indices = @transform_6, window_bounds = array<i64: 1, 128>}, {transform_indices = @transform_7, window_bounds = array<i64: 8, 128>}]} {
    %c0 = arith.constant 0 : index
    %c0_0 = arith.constant 0 : index
    %0 = vector.load %arg1[%c0, %c0_0] : memref<8x1024xf32, #tpu.memory_space<vmem>>, vector<8x1024xf32>
    %1 = arith.truncf %0 : vector<8x1024xf32> to vector<8x1024xbf16>
    %c0_1 = arith.constant 0 : index
    %c0_2 = arith.constant 0 : index
    %2 = vector.load %arg2[%c0_1, %c0_2] : memref<1024x384xbf16, #tpu.memory_space<vmem>>, vector<1024x384xbf16>
    %cst = arith.constant dense<0.000000e+00> : vector<8x384xf32>
    %3 = tpu.matmul %1, %2, %cst {dimension_numbers = #tpu.dot_dimension_numbers<[1], [0], [0], [1], [0, 0, 1, 1], [], []>} : vector<8x1024xbf16>, vector<1024x384xbf16>, vector<8x384xf32> -> vector<8x384xf32>
    %c0_3 = arith.constant 0 : index
    %c0_4 = arith.constant 0 : index
    %4 = vector.load %arg3[%c0_3, %c0_4] : memref<1x384xf32, #tpu.memory_space<vmem>>, vector<1x384xf32>
    %5 = vector.broadcast %4 : vector<1x384xf32> to vector<8x384xf32>
    %6 = arith.addf %3, %5 : vector<8x384xf32>
    %cst_5 = arith.constant 0.000000e+00 : f32
    %7 = vector.broadcast %cst_5 : f32 to vector<8x384xf32>
    %8 = arith.maximumf %6, %7 : vector<8x384xf32>
    %9 = arith.truncf %8 : vector<8x384xf32> to vector<8x384xbf16>
    %c0_6 = arith.constant 0 : index
    %c0_7 = arith.constant 0 : index
    %10 = vector.load %arg4[%c0_6, %c0_7] : memref<384x128xbf16, #tpu.memory_space<vmem>>, vector<384x128xbf16>
    %cst_8 = arith.constant dense<0.000000e+00> : vector<8x128xf32>
    %11 = tpu.matmul %9, %10, %cst_8 {dimension_numbers = #tpu.dot_dimension_numbers<[1], [0], [0], [1], [0, 0, 1, 1], [], []>} : vector<8x384xbf16>, vector<384x128xbf16>, vector<8x128xf32> -> vector<8x128xf32>
    %c0_9 = arith.constant 0 : index
    %c0_10 = arith.constant 0 : index
    %12 = vector.load %arg5[%c0_9, %c0_10] : memref<1x128xf32, #tpu.memory_space<vmem>>, vector<1x128xf32>
    %13 = vector.broadcast %12 : vector<1x128xf32> to vector<8x128xf32>
    %14 = arith.addf %11, %13 : vector<8x128xf32>
    %cst_11 = arith.constant 0.000000e+00 : f32
    %15 = vector.broadcast %cst_11 : f32 to vector<8x128xf32>
    %16 = arith.maximumf %14, %15 : vector<8x128xf32>
    %17 = arith.truncf %16 : vector<8x128xf32> to vector<8x128xbf16>
    %c0_12 = arith.constant 0 : index
    %c0_13 = arith.constant 0 : index
    %18 = vector.load %arg6[%c0_12, %c0_13] : memref<128x128xbf16, #tpu.memory_space<vmem>>, vector<128x128xbf16>
    %cst_14 = arith.constant dense<0.000000e+00> : vector<8x128xf32>
    %19 = tpu.matmul %17, %18, %cst_14 {dimension_numbers = #tpu.dot_dimension_numbers<[1], [0], [0], [1], [0, 0, 1, 1], [], []>} : vector<8x128xbf16>, vector<128x128xbf16>, vector<8x128xf32> -> vector<8x128xf32>
    %c0_15 = arith.constant 0 : index
    %c0_16 = arith.constant 0 : index
    %20 = vector.load %arg7[%c0_15, %c0_16] : memref<1x128xf32, #tpu.memory_space<vmem>>, vector<1x128xf32>
    %21 = vector.broadcast %20 : vector<1x128xf32> to vector<8x128xf32>
    %22 = arith.addf %19, %21 : vector<8x128xf32>
    %23 = arith.truncf %22 : vector<8x128xf32> to vector<8x128xbf16>
    %c0_17 = arith.constant 0 : index
    %c0_18 = arith.constant 0 : index
    %24 = vector.load %arg8[%c0_17, %c0_18] : memref<8x128xbf16, #tpu.memory_space<vmem>>, vector<8x128xbf16>
    tpu.vector_store %arg8[%c0_17, %c0_18], %23 {strides = array<i32>} : memref<8x128xbf16, #tpu.memory_space<vmem>>, vector<8x128xbf16>,
    return
  }
  func.func @transform_0(%arg0: i32) -> (i32, i32) {
    %c0_i32 = arith.constant 0 : i32
    %c0_i32_0 = arith.constant 0 : i32
    return %arg0, %c0_i32 : i32, i32
  }
  func.func @transform_1(%arg0: i32) -> (i32, i32) {
    %c0_i32 = arith.constant 0 : i32
    %c0_i32_0 = arith.constant 0 : i32
    %c0_i32_1 = arith.constant 0 : i32
    return %c0_i32, %c0_i32_0 : i32, i32
  }
  func.func @transform_2(%arg0: i32) -> (i32, i32) {
    %c0_i32 = arith.constant 0 : i32
    %c0_i32_0 = arith.constant 0 : i32
    %c0_i32_1 = arith.constant 0 : i32
    return %c0_i32, %c0_i32_0 : i32, i32
  }
  func.func @transform_3(%arg0: i32) -> (i32, i32) {
    %c0_i32 = arith.constant 0 : i32
    %c0_i32_0 = arith.constant 0 : i32
    %c0_i32_1 = arith.constant 0 : i32
    return %c0_i32, %c0_i32_0 : i32, i32
  }
  func.func @transform_4(%arg0: i32) -> (i32, i32) {
    %c0_i32 = arith.constant 0 : i32
    %c0_i32_0 = arith.constant 0 : i32
    %c0_i32_1 = arith.constant 0 : i32
    return %c0_i32, %c0_i32_0 : i32, i32
  }
  func.func @transform_5(%arg0: i32) -> (i32, i32) {
    %c0_i32 = arith.constant 0 : i32
    %c0_i32_0 = arith.constant 0 : i32
    %c0_i32_1 = arith.constant 0 : i32
    return %c0_i32, %c0_i32_0 : i32, i32
  }
  func.func @transform_6(%arg0: i32) -> (i32, i32) {
    %c0_i32 = arith.constant 0 : i32
    %c0_i32_0 = arith.constant 0 : i32
    %c0_i32_1 = arith.constant 0 : i32
    return %c0_i32, %c0_i32_0 : i32, i32
  }
  func.func @transform_7(%arg0: i32) -> (i32, i32) {
    %c0_i32 = arith.constant 0 : i32
    %c0_i32_0 = arith.constant 0 : i32
    return %arg0, %c0_i32 : i32, i32
  }
}

</mosaic_0001>

<llo_original>
// kernel: net_forward.1
$region0: #{net_forward.1}
  #allocation0 [shape = 'u32[]', space=smem, size = 0x4, offset = 0x4, fixed_abs, tag = 'smem constant byte address 0x4 - core index']
  #allocation1 [shape = 'u32[144,128]{1,0:T(1,128)}', space=vmem, size = 0x12000, scoped, tag = 'internal scratch']
  %s0 = inlined_call_operand.vmem [shape: f32[16,1024], index: 0, kind: input, shape index: {}]
  %s1 = inlined_call_operand.hbm [shape: bf16[1024,384], index: 1, kind: input, shape index: {}]
  %s2 = inlined_call_operand.vmem [shape: f32[1,384], index: 2, kind: input, shape index: {}]
  %s3 = inlined_call_operand.vmem [shape: bf16[384,128], index: 3, kind: input, shape index: {}]
  %s4 = inlined_call_operand.vmem [shape: f32[1,128], index: 4, kind: input, shape index: {}]
  %s5 = inlined_call_operand.vmem [shape: bf16[128,128], index: 5, kind: input, shape index: {}]
  %s6 = inlined_call_operand.vmem [shape: f32[1,128], index: 6, kind: input, shape index: {}]
  %s7 = inlined_call_operand.hbm [shape: bf16[16,128], index: 7, kind: output, shape index: {}]
  %s8 = sld [smem:[#allocation0]]
  $region65: #{net_forward.1} parent=0
    _
  %s10 = ssub.s32 1, %s8
  %s11 = scalar_select 0, %s10, %s8
  $region1: #{net_forward.1} parent=0
    #allocation2 [shape = 'u8[786432]{0}', space=vmem, size = 0xc0000, scoped, tag = 'input window, operand 1, single buffered']
    #allocation3 [shape = 's32[2]{0}', space=sflag, size = 0x8, scoped, tag = 'scoped memory for net_forward.1']
    #allocation4 [shape = 's32[2]{0}', space=sflag, size = 0x8, scoped, tag = 'scoped memory for net_forward.1']
    #allocation5 [shape = 'u8[4096]{0}', space=vmem, size = 0x1000, scoped, tag = 'output window, operand 0']
    %12 = vsyncpa [#allocation3], 0
    %13 = vsyncpa [#allocation4], 0
    %s14 = scalar_lea.sflag [#allocation4], 1
    %15 = vsyncpa %s14, 0
    loop: start=0, step=1, limit=4
    $region2: #{net_forward.1} parent=1 // loop_pre_header
      _
    $region3: #{net_forward.1} parent=1 // loop_header
      %s17 = sphi 0, %s21
      %p18 = scmp.ge.s32.totalorder %s17, 4
      %s27 = sphi 0, %s29
      %s30 = sphi 0, %s27
      %s31 = sphi 0, %s30
      %s47 = sphi 0, %s31
      %s51 = sphi 0, %s51
      %s53 = sphi 0, %s51
      %s54 = sphi 0, %s53
      %s68 = sphi 0, %s54
      %s72 = sphi 0, %s72
      %s74 = sphi 0, %s72
      %s75 = sphi 0, %s74
      %s89 = sphi 0, %s75
      %s93 = sphi 0, %s93
      %s95 = sphi 0, %s93
      %s96 = sphi 0, %s95
      %s110 = sphi 0, %s96
      %s114 = sphi 0, %s114
      %s116 = sphi 0, %s114
      %s117 = sphi 0, %s116
      %s131 = sphi 0, %s117
      %s135 = sphi 0, %s135
      %s137 = sphi 0, %s135
      %s138 = sphi 0, %s137
      %s152 = sphi 0, %s138
      %s156 = sphi 0, %s156
      %s158 = sphi 0, %s156
      %s159 = sphi 0, %s158
      %s173 = sphi 0, %s159
      %s179 = sphi 0, %s181
      %s182 = sphi 0, %s179
      %s183 = sphi 0, %s182
      %s199 = sphi 0, %s183
    $region4: #{net_forward.1} parent=1 // loop_header_branch
      %20 = sbr.rel (%p18) target = $region8
    $region5: #{net_forward.1} parent=1 // loop_body
      %s22 = ssub.s32 %s17, 1
      %s23 = ssub.s32 %s17, 2
      %s24 = sadd.s32 %s17, 1
      %s25 = ssub.s32 %s17, %s24
      %p26 = scmp.eq.s32.totalorder %s25, 0
      %s28 = sadd.s32 %s27, 1
      %s29 = scalar_select %p26, %s27, %s28
      %p32 = pneg %p26
      %p33 = scmp.eq.s32.totalorder %s17, 1
      %p34 = por %p32, %p33
      %p35 = scmp.ne.s32.totalorder %s27, %s30
      %p36 = scmp.eq.s32.totalorder %s17, 0
      %p37 = por %p35, %p36
      %p38 = scmp.ne.s32.totalorder %s27, %s30
      %p39 = scmp.eq.s32.totalorder %s22, 1
      %p40 = por %p38, %p39
      %p41 = scmp.ne.s32.totalorder %s30, %s31
      %p42 = scmp.eq.s32.totalorder %s22, 0
      %p43 = por %p41, %p42
      %p44 = scmp.ne.s32.totalorder %s30, %s31
      %p45 = scmp.eq.s32.totalorder %s23, 1
      %p46 = por %p44, %p45
      %p48 = scmp.ne.s32.totalorder %s31, %s47
      %p49 = scmp.eq.s32.totalorder %s23, 0
      %p50 = por %p48, %p49
      %s52 = sadd.s32 %s51, 1
      %p55 = scmp.eq.s32.totalorder %s17, 1
      %p56 = scmp.ne.s32.totalorder %s51, %s53
      %p57 = scmp.eq.s32.totalorder %s17, 0
      %p58 = por %p56, %p57
      %p59 = scmp.ne.s32.totalorder %s51, %s53
      %p60 = scmp.eq.s32.totalorder %s22, 1
      %p61 = por %p59, %p60
      %p62 = scmp.ne.s32.totalorder %s53, %s54
      %p63 = scmp.eq.s32.totalorder %s22, 0
      %p64 = por %p62, %p63
      %p65 = scmp.ne.s32.totalorder %s53, %s54
      %p66 = scmp.eq.s32.totalorder %s23, 1
      %p67 = por %p65, %p66
      %p69 = scmp.ne.s32.totalorder %s54, %s68
      %p70 = scmp.eq.s32.totalorder %s23, 0
      %p71 = por %p69, %p70
      %s73 = sadd.s32 %s72, 1
      %p76 = scmp.eq.s32.totalorder %s17, 1
      %p77 = scmp.ne.s32.totalorder %s72, %s74
      %p78 = scmp.eq.s32.totalorder %s17, 0
      %p79 = por %p77, %p78
      %p80 = scmp.ne.s32.totalorder %s72, %s74
      %p81 = scmp.eq.s32.totalorder %s22, 1
      %p82 = por %p80, %p81
      %p83 = scmp.ne.s32.totalorder %s74, %s75
      %p84 = scmp.eq.s32.totalorder %s22, 0
      %p85 = por %p83, %p84
      %p86 = scmp.ne.s32.totalorder %s74, %s75
      %p87 = scmp.eq.s32.totalorder %s23, 1
      %p88 = por %p86, %p87
      %p90 = scmp.ne.s32.totalorder %s75, %s89
      %p91 = scmp.eq.s32.totalorder %s23, 0
      %p92 = por %p90, %p91
      %s94 = sadd.s32 %s93, 1
      %p97 = scmp.eq.s32.totalorder %s17, 1
      %p98 = scmp.ne.s32.totalorder %s93, %s95
      %p99 = scmp.eq.s32.totalorder %s17, 0
      %p100 = por %p98, %p99
      %p101 = scmp.ne.s32.totalorder %s93, %s95
      %p102 = scmp.eq.s32.totalorder %s22, 1
      %p103 = por %p101, %p102
      %p104 = scmp.ne.s32.totalorder %s95, %s96
      %p105 = scmp.eq.s32.totalorder %s22, 0
      %p106 = por %p104, %p105
      %p107 = scmp.ne.s32.totalorder %s95, %s96
      %p108 = scmp.eq.s32.totalorder %s23, 1
      %p109 = por %p107, %p108
      %p111 = scmp.ne.s32.totalorder %s96, %s110
      %p112 = scmp.eq.s32.totalorder %s23, 0
      %p113 = por %p111, %p112
      %s115 = sadd.s32 %s114, 1
      %p118 = scmp.eq.s32.totalorder %s17, 1
      %p119 = scmp.ne.s32.totalorder %s114, %s116
      %p120 = scmp.eq.s32.totalorder %s17, 0
      %p121 = por %p119, %p120
      %p122 = scmp.ne.s32.totalorder %s114, %s116
      %p123 = scmp.eq.s32.totalorder %s22, 1
      %p124 = por %p122, %p123
      %p125 = scmp.ne.s32.totalorder %s116, %s117
      %p126 = scmp.eq.s32.totalorder %s22, 0
      %p127 = por %p125, %p126
      %p128 = scmp.ne.s32.totalorder %s116, %s117
      %p129 = scmp.eq.s32.totalorder %s23, 1
      %p130 = por %p128, %p129
      %p132 = scmp.ne.s32.totalorder %s117, %s131
      %p133 = scmp.eq.s32.totalorder %s23, 0
      %p134 = por %p132, %p133
      %s136 = sadd.s32 %s135, 1
      %p139 = scmp.eq.s32.totalorder %s17, 1
      %p140 = scmp.ne.s32.totalorder %s135, %s137
      %p141 = scmp.eq.s32.totalorder %s17, 0
      %p142 = por %p140, %p141
      %p143 = scmp.ne.s32.totalorder %s135, %s137
      %p144 = scmp.eq.s32.totalorder %s22, 1
      %p145 = por %p143, %p144
      %p146 = scmp.ne.s32.totalorder %s137, %s138
      %p147 = scmp.eq.s32.totalorder %s22, 0
      %p148 = por %p146, %p147
      %p149 = scmp.ne.s32.totalorder %s137, %s138
      %p150 = scmp.eq.s32.totalorder %s23, 1
      %p151 = por %p149, %p150
      %p153 = scmp.ne.s32.totalorder %s138, %s152
      %p154 = scmp.eq.s32.totalorder %s23, 0
      %p155 = por %p153, %p154
      %s157 = sadd.s32 %s156, 1
      %p160 = scmp.eq.s32.totalorder %s17, 1
      %p161 = scmp.ne.s32.totalorder %s156, %s158
      %p162 = scmp.eq.s32.totalorder %s17, 0
      %p163 = por %p161, %p162
      %p164 = scmp.ne.s32.totalorder %s156, %s158
      %p165 = scmp.eq.s32.totalorder %s22, 1
      %p166 = por %p164, %p165
      %p167 = scmp.ne.s32.totalorder %s158, %s159
      %p168 = scmp.eq.s32.totalorder %s22, 0
      %p169 = por %p167, %p168
      %p170 = scmp.ne.s32.totalorder %s158, %s159
      %p171 = scmp.eq.s32.totalorder %s23, 1
      %p172 = por %p170, %p171
      %p174 = scmp.ne.s32.totalorder %s159, %s173
      %p175 = scmp.eq.s32.totalorder %s23, 0
      %p176 = por %p174, %p175
      %s177 = ssub.s32 %s17, %s24
      %p178 = scmp.eq.s32.totalorder %s177, 0
      %s180 = sadd.s32 %s179, 1
      %s181 = scalar_select %p178, %s179, %s180
      %p184 = pneg %p178
      %p185 = scmp.eq.s32.totalorder %s17, 1
      %p186 = por %p184, %p185
      %p187 = scmp.ne.s32.totalorder %s179, %s182
      %p188 = scmp.eq.s32.totalorder %s17, 0
      %p189 = por %p187, %p188
      %p190 = scmp.ne.s32.totalorder %s179, %s182
      %p191 = scmp.eq.s32.totalorder %s22, 1
      %p192 = por %p190, %p191
      %p193 = scmp.ne.s32.totalorder %s182, %s183
      %p194 = scmp.eq.s32.totalorder %s22, 0
      %p195 = por %p193, %p194
      %p196 = scmp.ne.s32.totalorder %s182, %s183
      %p197 = scmp.eq.s32.totalorder %s23, 1
      %p198 = por %p196, %p197
      %p200 = scmp.ne.s32.totalorder %s183, %s199
      %p201 = scmp.eq.s32.totalorder %s23, 0
      %p202 = por %p200, %p201
      %p203 = scmp.le.s32.totalorder 1, %s17
      %p204 = scmp.lt.s32.totalorder %s17, 3
      %p205 = pnand %p203, %p204
      %p206 = pneg %p205
      // Predicated region
      $region9: #{net_forward.1} parent=5 // pred_check
        _
      $region10: #{net_forward.1} parent=5 // pred_check_branch
        %208 = sbr.rel (%p205) target = $region12
      $region11: #{net_forward.1} parent=5 // pred_region
        %s209 = ssub.s32 %s17, 1
        // Predicated region
        $region13: #{net_forward.1} parent=11 // pred_check
          %p210 = pneg %p64
        $region14: #{net_forward.1} parent=11 // pred_check_branch
          %212 = sbr.rel (%p210) target = $region16
        $region15: #{net_forward.1} parent=11 // pred_region
          %s214 = ssub.s32 24576, 24576
          %215 = vsyncadd [#allocation3], %s214
          %s216 = sshll.u32 [#allocation2], 4
          %s217 = int_to_ptr.vmem [resolvable:$true] %s216
          %222 = dma.hbm_to_vmem [thread:$0]  %s1, 24576, %s217, [#allocation3], 192, 192, 12
        $region16: #{net_forward.1} parent=11 // pred_fallthru
          _
        // Predicated region
        $region17: #{net_forward.1} parent=11 // pred_check
          %p223 = pneg %p85
        $region18: #{net_forward.1} parent=11 // pred_check_branch
          %225 = sbr.rel (%p223) target = $region20
        $region19: #{net_forward.1} parent=11 // pred_region
          _
        $region20: #{net_forward.1} parent=11 // pred_fallthru
          _
        // Predicated region
        $region21: #{net_forward.1} parent=11 // pred_check
          %p226 = pneg %p106
        $region22: #{net_forward.1} parent=11 // pred_check_branch
          %228 = sbr.rel (%p226) target = $region24
        $region23: #{net_forward.1} parent=11 // pred_region
          _
        $region24: #{net_forward.1} parent=11 // pred_fallthru
          _
        // Predicated region
        $region25: #{net_forward.1} parent=11 // pred_check
          %p229 = pneg %p127
        $region26: #{net_forward.1} parent=11 // pred_check_branch
          %231 = sbr.rel (%p229) target = $region28
        $region27: #{net_forward.1} parent=11 // pred_region
          _
        $region28: #{net_forward.1} parent=11 // pred_fallthru
          _
        // Predicated region
        $region29: #{net_forward.1} parent=11 // pred_check
          %p232 = pneg %p148
        $region30: #{net_forward.1} parent=11 // pred_check_branch
          %234 = sbr.rel (%p232) target = $region32
        $region31: #{net_forward.1} parent=11 // pred_region
          _
        $region32: #{net_forward.1} parent=11 // pred_fallthru
          _
        // Predicated region
        $region33: #{net_forward.1} parent=11 // pred_check
          %p235 = pneg %p169
        $region34: #{net_forward.1} parent=11 // pred_check_branch
          %237 = sbr.rel (%p235) target = $region36
        $region35: #{net_forward.1} parent=11 // pred_region
          _
        $region36: #{net_forward.1} parent=11 // pred_fallthru
          _
      $region12: #{net_forward.1} parent=5 // pred_fallthru
        _
      %p238 = scmp.lt.s32.totalorder %s17, 2
      // Predicated region
      $region37: #{net_forward.1} parent=5 // pred_check
        %p239 = pneg %p238
      $region38: #{net_forward.1} parent=5 // pred_check_branch
        %241 = sbr.rel (%p239) target = $region40
      $region39: #{net_forward.1} parent=5 // pred_region
        // Predicated region
        $region41: #{net_forward.1} parent=39 // pred_check
          %p242 = pneg %p37
        $region42: #{net_forward.1} parent=39 // pred_check_branch
          %244 = sbr.rel (%p242) target = $region44
        $region43: #{net_forward.1} parent=39 // pred_region
          %p245 = scmp.lt.s32.totalorder %s17, 1
          %s246 = scalar_select %p245, %s17, 1
          %s247 = smul.addr %s246, 8
          %s248 = smul.addr %s247, 8
          %s249 = scalar_lea.vmem %s0, %s248
        $region44: #{net_forward.1} parent=39 // pred_fallthru
          _
      $region40: #{net_forward.1} parent=5 // pred_fallthru
        _
      %p250 = scmp.le.s32.totalorder 1, %s17
      %p251 = scmp.lt.s32.totalorder %s17, 3
      %p252 = pnand %p250, %p251
      %p253 = pneg %p252
      // Predicated region
      $region45: #{net_forward.1} parent=5 // pred_check
        _
      $region46: #{net_forward.1} parent=5 // pred_check_branch
        %255 = sbr.rel (%p252) target = $region48
      $region47: #{net_forward.1} parent=5 // pred_region
        %s256 = ssub.s32 %s17, 1
        // Predicated region
        $region49: #{net_forward.1} parent=47 // pred_check
          %p257 = pneg %p64
        $region50: #{net_forward.1} parent=47 // pred_check_branch
          %259 = sbr.rel (%p257) target = $region52
        $region51: #{net_forward.1} parent=47 // pred_region
          %260 = dma.done [#allocation3], 24576
        $region52: #{net_forward.1} parent=47 // pred_fallthru
          _
        %p261 = scmp.lt.s32.totalorder %s22, 1
        %s262 = scalar_select %p261, %s22, 1
        %s263 = smul.addr %s262, 8
        %s264 = smul.addr %s263, 8
        %s265 = scalar_lea.vmem %s0, %s264
        %p266 = pneg %p43
        %p267 = pneg %p40
        %p268 = pneg %p64
        %p269 = pneg %p61
        %p270 = pneg %p85
        %p271 = pneg %p82
        %p272 = pneg %p106
        %p273 = pneg %p103
        %p274 = pneg %p127
        %p275 = pneg %p124
        %p276 = pneg %p148
        %p277 = pneg %p145
        %p278 = pneg %p169
        %p279 = pneg %p166
        %p280 = pneg %p195
        %p281 = pneg %p192
        %s282 = sand.u32 %s182, 1
        %s283 = scalar_lea.sflag [#allocation4], %s282
        %s284 = sand.u32 %s182, 1
        %s285 = smul.addr %s284, 4
        %s286 = scalar_lea.vmem [#allocation5], %s285
        %p287 = scmp.lt.s32.totalorder %s22, 1
        %s288 = scalar_select %p287, %s22, 1
        %s289 = smul.addr %s288, 8
        %s290 = smul.addr %s289, 8
        %s291 = scalar_lea.vmem %s0, %s290
        %v293 = vld [vmem:[%s291] sm:$0xff]
        %v294 = vld [vmem:[%s291 + $0x8] sm:$0xff]
        %v295 = vld [vmem:[%s291 + $0x10] sm:$0xff]
        %v296 = vld [vmem:[%s291 + $0x18] sm:$0xff]
        %v297 = vld [vmem:[%s291 + $0x20] sm:$0xff]
        %v298 = vld [vmem:[%s291 + $0x28] sm:$0xff]
        %v299 = vld [vmem:[%s291 + $0x30] sm:$0xff]
        %v300 = vld [vmem:[%s291 + $0x38] sm:$0xff]
        %v301 = vpack.c.bf16 %v293, %v293
        %v302 = vpack.c.bf16 %v294, %v294
        %v303 = vpack.c.bf16 %v295, %v295
        %v304 = vpack.c.bf16 %v296, %v296
        %v305 = vpack.c.bf16 %v297, %v297
        %v306 = vpack.c.bf16 %v298, %v298
        %v307 = vpack.c.bf16 %v299, %v299
        %v308 = vpack.c.bf16 %v300, %v300
        %v309 = vld [vmem:[#allocation2] sm:$0xff]
        %v310 = vld [vmem:[#allocation2 + $0x8] sm:$0xf]
        %v311 = vld [vmem:[#allocation2 + $0xc] sm:$0xff]
        %v312 = vld [vmem:[#allocation2 + $0x14] sm:$0xf]
        %v313 = vld [vmem:[#allocation2 + $0x18] sm:$0xff]
        %v314 = vld [vmem:[#allocation2 + $0x20] sm:$0xf]
        %v315 = vld [vmem:[#allocation2 + $0x24] sm:$0xff]
        %v316 = vld [vmem:[#allocation2 + $0x2c] sm:$0xf]
        %v317 = vld [vmem:[#allocation2 + $0x30] sm:$0xff]
        %v318 = vld [vmem:[#allocation2 + $0x38] sm:$0xf]
        %v319 = vld [vmem:[#allocation2 + $0x3c] sm:$0xff]
        %v320 = vld [vmem:[#allocation2 + $0x44] sm:$0xf]
        %v321 = vld [vmem:[#allocation2 + $0x48] sm:$0xff]
        %v322 = vld [vmem:[#allocation2 + $0x50] sm:$0xf]
        %v323 = vld [vmem:[#allocation2 + $0x54] sm:$0xff]
        %v324 = vld [vmem:[#allocation2 + $0x5c] sm:$0xf]
        %v325 = vld [vmem:[#allocation2 + $0x60] sm:$0xff]
        %v326 = vld [vmem:[#allocation2 + $0x68] sm:$0xf]
        %v327 = vld [vmem:[#allocation2 + $0x6c] sm:$0xff]
        %v328 = vld [vmem:[#allocation2 + $0x74] sm:$0xf]
        %v329 = vld [vmem:[#allocation2 + $0x78] sm:$0xff]
        %v330 = vld [vmem:[#allocation2 + $0x80] sm:$0xf]
        %v331 = vld [vmem:[#allocation2 + $0x84] sm:$0xff]
        %v332 = vld [vmem:[#allocation2 + $0x8c] sm:$0xf]
        %v333 = vld [vmem:[#allocation2 + $0x90] sm:$0xff]
        %v334 = vld [vmem:[#allocation2 + $0x98] sm:$0xf]
        %v335 = vld [vmem:[#allocation2 + $0x9c] sm:$0xff]
        %v336 = vld [vmem:[#allocation2 + $0xa4] sm:$0xf]
        %v337 = vld [vmem:[#allocation2 + $0xa8] sm:$0xff]
        %v338 = vld [vmem:[#allocation2 + $0xb0] sm:$0xf]
        %v339 = vld [vmem:[#allocation2 + $0xb4] sm:$0xff]
        %v340 = vld [vmem:[#allocation2 + $0xbc] sm:$0xf]
        %v341 = vld [vmem:[#allocation2 + $0xc0] sm:$0xff]
        %v342 = vld [vmem:[#allocation2 + $0xc8] sm:$0xf]
        %v343 = vld [vmem:[#allocation2 + $0xcc] sm:$0xff]
        %v344 = vld [vmem:[#allocation2 + $0xd4] sm:$0xf]
        %v345 = vld [vmem:[#allocation2 + $0xd8] sm:$0xff]
        %v346 = vld [vmem:[#allocation2 + $0xe0] sm:$0xf]
        %v347 = vld [vmem:[#allocation2 + $0xe4] sm:$0xff]
        %v348 = vld [vmem:[#allocation2 + $0xec] sm:$0xf]
        %v349 = vld [vmem:[#allocation2 + $0xf0] sm:$0xff]
        %v350 = vld [vmem:[#allocation2 + $0xf8] sm:$0xf]
        %v351 = vld [vmem:[#allocation2 + $0xfc] sm:$0xff]
        %v352 = vld [vmem:[#allocation2 + $0x104] sm:$0xf]
        %v353 = vld [vmem:[#allocation2 + $0x108] sm:$0xff]
        %v354 = vld [vmem:[#allocation2 + $0x110] sm:$0xf]
        %v355 = vld [vmem:[#allocation2 + $0x114] sm:$0xff]
        %v356 = vld [vmem:[#allocation2 + $0x11c] sm:$0xf]
        %v357 = vld [vmem:[#allocation2 + $0x120] sm:$0xff]
        %v358 = vld [vmem:[#allocation2 + $0x128] sm:$0xf]
        %v359 = vld [vmem:[#allocation2 + $0x12c] sm:$0xff]
        %v360 = vld [vmem:[#allocation2 + $0x134] sm:$0xf]
        %v361 = vld [vmem:[#allocation2 + $0x138] sm:$0xff]
        %v362 = vld [vmem:[#allocation2 + $0x140] sm:$0xf]
        %v363 = vld [vmem:[#allocation2 + $0x144] sm:$0xff]
        %v364 = vld [vmem:[#allocation2 + $0x14c] sm:$0xf]
        %v365 = vld [vmem:[#allocation2 + $0x150] sm:$0xff]
        %v366 = vld [vmem:[#allocation2 + $0x158] sm:$0xf]
        %v367 = vld [vmem:[#allocation2 + $0x15c] sm:$0xff]
        %v368 = vld [vmem:[#allocation2 + $0x164] sm:$0xf]
        %v369 = vld [vmem:[#allocation2 + $0x168] sm:$0xff]
        %v370 = vld [vmem:[#allocation2 + $0x170] sm:$0xf]
        %v371 = vld [vmem:[#allocation2 + $0x174] sm:$0xff]
        %v372 = vld [vmem:[#allocation2 + $0x17c] sm:$0xf]
        %v373 = vld [vmem:[#allocation2 + $0x180] sm:$0xff]
        %v374 = vld [vmem:[#allocation2 + $0x188] sm:$0xf]
        %v375 = vld [vmem:[#allocation2 + $0x18c] sm:$0xff]
        %v376 = vld [vmem:[#allocation2 + $0x194] sm:$0xf]
        %v377 = vld [vmem:[#allocation2 + $0x198] sm:$0xff]
        %v378 = vld [vmem:[#allocation2 + $0x1a0] sm:$0xf]
        %v379 = vld [vmem:[#allocation2 + $0x1a4] sm:$0xff]
        %v380 = vld [vmem:[#allocation2 + $0x1ac] sm:$0xf]
        %v381 = vld [vmem:[#allocation2 + $0x1b0] sm:$0xff]
        %v382 = vld [vmem:[#allocation2 + $0x1b8] sm:$0xf]
        %v383 = vld [vmem:[#allocation2 + $0x1bc] sm:$0xff]
        %v384 = vld [vmem:[#allocation2 + $0x1c4] sm:$0xf]
        %v385 = vld [vmem:[#allocation2 + $0x1c8] sm:$0xff]
        %v386 = vld [vmem:[#allocation2 + $0x1d0] sm:$0xf]
        %v387 = vld [vmem:[#allocation2 + $0x1d4] sm:$0xff]
        %v388 = vld [vmem:[#allocation2 + $0x1dc] sm:$0xf]
        %v389 = vld [vmem:[#allocation2 + $0x1e0] sm:$0xff]
        %v390 = vld [vmem:[#allocation2 + $0x1e8] sm:$0xf]
        %v391 = vld [vmem:[#allocation2 + $0x1ec] sm:$0xff]
        %v392 = vld [vmem:[#allocation2 + $0x1f4] sm:$0xf]
        %v393 = vld [vmem:[#allocation2 + $0x1f8] sm:$0xff]
        %v394 = vld [vmem:[#allocation2 + $0x200] sm:$0xf]
        %v395 = vld [vmem:[#allocation2 + $0x204] sm:$0xff]
        %v396 = vld [vmem:[#allocation2 + $0x20c] sm:$0xf]
        %v397 = vld [vmem:[#allocation2 + $0x210] sm:$0xff]
        %v398 = vld [vmem:[#allocation2 + $0x218] sm:$0xf]
        %v399 = vld [vmem:[#allocation2 + $0x21c] sm:$0xff]
        %v400 = vld [vmem:[#allocation2 + $0x224] sm:$0xf]
        %v401 = vld [vmem:[#allocation2 + $0x228] sm:$0xff]
        %v402 = vld [vmem:[#allocation2 + $0x230] sm:$0xf]
        %v403 = vld [vmem:[#allocation2 + $0x234] sm:$0xff]
        %v404 = vld [vmem:[#allocation2 + $0x23c] sm:$0xf]
        %v405 = vld [vmem:[#allocation2 + $0x240] sm:$0xff]
        %v406 = vld [vmem:[#allocation2 + $0x248] sm:$0xf]
        %v407 = vld [vmem:[#allocation2 + $0x24c] sm:$0xff]
        %v408 = vld [vmem:[#allocation2 + $0x254] sm:$0xf]
        %v409 = vld [vmem:[#allocation2 + $0x258] sm:$0xff]
        %v410 = vld [vmem:[#allocation2 + $0x260] sm:$0xf]
        %v411 = vld [vmem:[#allocation2 + $0x264] sm:$0xff]
        %v412 = vld [vmem:[#allocation2 + $0x26c] sm:$0xf]
        %v413 = vld [vmem:[#allocation2 + $0x270] sm:$0xff]
        %v414 = vld [vmem:[#allocation2 + $0x278] sm:$0xf]
        %v415 = vld [vmem:[#allocation2 + $0x27c] sm:$0xff]
        %v416 = vld [vmem:[#allocation2 + $0x284] sm:$0xf]
        %v417 = vld [vmem:[#allocation2 + $0x288] sm:$0xff]
        %v418 = vld [vmem:[#allocation2 + $0x290] sm:$0xf]
        %v419 = vld [vmem:[#allocation2 + $0x294] sm:$0xff]
        %v420 = vld [vmem:[#allocation2 + $0x29c] sm:$0xf]
        %v421 = vld [vmem:[#allocation2 + $0x2a0] sm:$0xff]
        %v422 = vld [vmem:[#allocation2 + $0x2a8] sm:$0xf]
        %v423 = vld [vmem:[#allocation2 + $0x2ac] sm:$0xff]
        %v424 = vld [vmem:[#allocation2 + $0x2b4] sm:$0xf]
        %v425 = vld [vmem:[#allocation2 + $0x2b8] sm:$0xff]
        %v426 = vld [vmem:[#allocation2 + $0x2c0] sm:$0xf]
        %v427 = vld [vmem:[#allocation2 + $0x2c4] sm:$0xff]
        %v428 = vld [vmem:[#allocation2 + $0x2cc] sm:$0xf]
        %v429 = vld [vmem:[#allocation2 + $0x2d0] sm:$0xff]
        %v430 = vld [vmem:[#allocation2 + $0x2d8] sm:$0xf]
        %v431 = vld [vmem:[#allocation2 + $0x2dc] sm:$0xff]
        %v432 = vld [vmem:[#allocation2 + $0x2e4] sm:$0xf]
        %v433 = vld [vmem:[#allocation2 + $0x2e8] sm:$0xff]
        %v434 = vld [vmem:[#allocation2 + $0x2f0] sm:$0xf]
        %v435 = vld [vmem:[#allocation2 + $0x2f4] sm:$0xff]
        %v436 = vld [vmem:[#allocation2 + $0x2fc] sm:$0xf]
        %v437 = vld [vmem:[#allocation2 + $0x300] sm:$0xff]
        %v438 = vld [vmem:[#allocation2 + $0x308] sm:$0xf]
        %v439 = vld [vmem:[#allocation2 + $0x30c] sm:$0xff]
        %v440 = vld [vmem:[#allocation2 + $0x314] sm:$0xf]
        %v441 = vld [vmem:[#allocation2 + $0x318] sm:$0xff]
        %v442 = vld [vmem:[#allocation2 + $0x320] sm:$0xf]
        %v443 = vld [vmem:[#allocation2 + $0x324] sm:$0xff]
        %v444 = vld [vmem:[#allocation2 + $0x32c] sm:$0xf]
        %v445 = vld [vmem:[#allocation2 + $0x330] sm:$0xff]
        %v446 = vld [vmem:[#allocation2 + $0x338] sm:$0xf]
        %v447 = vld [vmem:[#allocation2 + $0x33c] sm:$0xff]
        %v448 = vld [vmem:[#allocation2 + $0x344] sm:$0xf]
        %v449 = vld [vmem:[#allocation2 + $0x348] sm:$0xff]
        %v450 = vld [vmem:[#allocation2 + $0x350] sm:$0xf]
        %v451 = vld [vmem:[#allocation2 + $0x354] sm:$0xff]
        %v452 = vld [vmem:[#allocation2 + $0x35c] sm:$0xf]
        %v453 = vld [vmem:[#allocation2 + $0x360] sm:$0xff]
        %v454 = vld [vmem:[#allocation2 + $0x368] sm:$0xf]
        %v455 = vld [vmem:[#allocation2 + $0x36c] sm:$0xff]
        %v456 = vld [vmem:[#allocation2 + $0x374] sm:$0xf]
        %v457 = vld [vmem:[#allocation2 + $0x378] sm:$0xff]
        %v458 = vld [vmem:[#allocation2 + $0x380] sm:$0xf]
        %v459 = vld [vmem:[#allocation2 + $0x384] sm:$0xff]
        %v460 = vld [vmem:[#allocation2 + $0x38c] sm:$0xf]
        %v461 = vld [vmem:[#allocation2 + $0x390] sm:$0xff]
        %v462 = vld [vmem:[#allocation2 + $0x398] sm:$0xf]
        %v463 = vld [vmem:[#allocation2 + $0x39c] sm:$0xff]
        %v464 = vld [vmem:[#allocation2 + $0x3a4] sm:$0xf]
        %v465 = vld [vmem:[#allocation2 + $0x3a8] sm:$0xff]
        %v466 = vld [vmem:[#allocation2 + $0x3b0] sm:$0xf]
        %v467 = vld [vmem:[#allocation2 + $0x3b4] sm:$0xff]
        %v468 = vld [vmem:[#allocation2 + $0x3bc] sm:$0xf]
        %v469 = vld [vmem:[#allocation2 + $0x3c0] sm:$0xff]
        %v470 = vld [vmem:[#allocation2 + $0x3c8] sm:$0xf]
        %v471 = vld [vmem:[#allocation2 + $0x3cc] sm:$0xff]
        %v472 = vld [vmem:[#allocation2 + $0x3d4] sm:$0xf]
        %v473 = vld [vmem:[#allocation2 + $0x3d8] sm:$0xff]
        %v474 = vld [vmem:[#allocation2 + $0x3e0] sm:$0xf]
        %v475 = vld [vmem:[#allocation2 + $0x3e4] sm:$0xff]
        %v476 = vld [vmem:[#allocation2 + $0x3ec] sm:$0xf]
        %v477 = vld [vmem:[#allocation2 + $0x3f0] sm:$0xff]
        %v478 = vld [vmem:[#allocation2 + $0x3f8] sm:$0xf]
        %v479 = vld [vmem:[#allocation2 + $0x3fc] sm:$0xff]
        %v480 = vld [vmem:[#allocation2 + $0x404] sm:$0xf]
        %v481 = vld [vmem:[#allocation2 + $0x408] sm:$0xff]
        %v482 = vld [vmem:[#allocation2 + $0x410] sm:$0xf]
        %v483 = vld [vmem:[#allocation2 + $0x414] sm:$0xff]
        %v484 = vld [vmem:[#allocation2 + $0x41c] sm:$0xf]
        %v485 = vld [vmem:[#allocation2 + $0x420] sm:$0xff]
        %v486 = vld [vmem:[#allocation2 + $0x428] sm:$0xf]
        %v487 = vld [vmem:[#allocation2 + $0x42c] sm:$0xff]
        %v488 = vld [vmem:[#allocation2 + $0x434] sm:$0xf]
        %v489 = vld [vmem:[#allocation2 + $0x438] sm:$0xff]
        %v490 = vld [vmem:[#allocation2 + $0x440] sm:$0xf]
        %v491 = vld [vmem:[#allocation2 + $0x444] sm:$0xff]
        %v492 = vld [vmem:[#allocation2 + $0x44c] sm:$0xf]
        %v493 = vld [vmem:[#allocation2 + $0x450] sm:$0xff]
        %v494 = vld [vmem:[#allocation2 + $0x458] sm:$0xf]
        %v495 = vld [vmem:[#allocation2 + $0x45c] sm:$0xff]
        %v496 = vld [vmem:[#allocation2 + $0x464] sm:$0xf]
        %v497 = vld [vmem:[#allocation2 + $0x468] sm:$0xff]
        %v498 = vld [vmem:[#allocation2 + $0x470] sm:$0xf]
        %v499 = vld [vmem:[#allocation2 + $0x474] sm:$0xff]
        %v500 = vld [vmem:[#allocation2 + $0x47c] sm:$0xf]
        %v501 = vld [vmem:[#allocation2 + $0x480] sm:$0xff]
        %v502 = vld [vmem:[#allocation2 + $0x488] sm:$0xf]
        %v503 = vld [vmem:[#allocation2 + $0x48c] sm:$0xff]
        %v504 = vld [vmem:[#allocation2 + $0x494] sm:$0xf]
        %v505 = vld [vmem:[#allocation2 + $0x498] sm:$0xff]
        %v506 = vld [vmem:[#allocation2 + $0x4a0] sm:$0xf]
        %v507 = vld [vmem:[#allocation2 + $0x4a4] sm:$0xff]
        %v508 = vld [vmem:[#allocation2 + $0x4ac] sm:$0xf]
        %v509 = vld [vmem:[#allocation2 + $0x4b0] sm:$0xff]
        %v510 = vld [vmem:[#allocation2 + $0x4b8] sm:$0xf]
        %v511 = vld [vmem:[#allocation2 + $0x4bc] sm:$0xff]
        %v512 = vld [vmem:[#allocation2 + $0x4c4] sm:$0xf]
        %v513 = vld [vmem:[#allocation2 + $0x4c8] sm:$0xff]
        %v514 = vld [vmem:[#allocation2 + $0x4d0] sm:$0xf]
        %v515 = vld [vmem:[#allocation2 + $0x4d4] sm:$0xff]
        %v516 = vld [vmem:[#allocation2 + $0x4dc] sm:$0xf]
        %v517 = vld [vmem:[#allocation2 + $0x4e0] sm:$0xff]
        %v518 = vld [vmem:[#allocation2 + $0x4e8] sm:$0xf]
        %v519 = vld [vmem:[#allocation2 + $0x4ec] sm:$0xff]
        %v520 = vld [vmem:[#allocation2 + $0x4f4] sm:$0xf]
        %v521 = vld [vmem:[#allocation2 + $0x4f8] sm:$0xff]
        %v522 = vld [vmem:[#allocation2 + $0x500] sm:$0xf]
        %v523 = vld [vmem:[#allocation2 + $0x504] sm:$0xff]
        %v524 = vld [vmem:[#allocation2 + $0x50c] sm:$0xf]
        %v525 = vld [vmem:[#allocation2 + $0x510] sm:$0xff]
        %v526 = vld [vmem:[#allocation2 + $0x518] sm:$0xf]
        %v527 = vld [vmem:[#allocation2 + $0x51c] sm:$0xff]
        %v528 = vld [vmem:[#allocation2 + $0x524] sm:$0xf]
        %v529 = vld [vmem:[#allocation2 + $0x528] sm:$0xff]
        %v530 = vld [vmem:[#allocation2 + $0x530] sm:$0xf]
        %v531 = vld [vmem:[#allocation2 + $0x534] sm:$0xff]
        %v532 = vld [vmem:[#allocation2 + $0x53c] sm:$0xf]
        %v533 = vld [vmem:[#allocation2 + $0x540] sm:$0xff]
        %v534 = vld [vmem:[#allocation2 + $0x548] sm:$0xf]
        %v535 = vld [vmem:[#allocation2 + $0x54c] sm:$0xff]
        %v536 = vld [vmem:[#allocation2 + $0x554] sm:$0xf]
        %v537 = vld [vmem:[#allocation2 + $0x558] sm:$0xff]
        %v538 = vld [vmem:[#allocation2 + $0x560] sm:$0xf]
        %v539 = vld [vmem:[#allocation2 + $0x564] sm:$0xff]
        %v540 = vld [vmem:[#allocation2 + $0x56c] sm:$0xf]
        %v541 = vld [vmem:[#allocation2 + $0x570] sm:$0xff]
        %v542 = vld [vmem:[#allocation2 + $0x578] sm:$0xf]
        %v543 = vld [vmem:[#allocation2 + $0x57c] sm:$0xff]
        %v544 = vld [vmem:[#allocation2 + $0x584] sm:$0xf]
        %v545 = vld [vmem:[#allocation2 + $0x588] sm:$0xff]
        %v546 = vld [vmem:[#allocation2 + $0x590] sm:$0xf]
        %v547 = vld [vmem:[#allocation2 + $0x594] sm:$0xff]
        %v548 = vld [vmem:[#allocation2 + $0x59c] sm:$0xf]
        %v549 = vld [vmem:[#allocation2 + $0x5a0] sm:$0xff]
        %v550 = vld [vmem:[#allocation2 + $0x5a8] sm:$0xf]
        %v551 = vld [vmem:[#allocation2 + $0x5ac] sm:$0xff]
        %v552 = vld [vmem:[#allocation2 + $0x5b4] sm:$0xf]
        %v553 = vld [vmem:[#allocation2 + $0x5b8] sm:$0xff]
        %v554 = vld [vmem:[#allocation2 + $0x5c0] sm:$0xf]
        %v555 = vld [vmem:[#allocation2 + $0x5c4] sm:$0xff]
        %v556 = vld [vmem:[#allocation2 + $0x5cc] sm:$0xf]
        %v557 = vld [vmem:[#allocation2 + $0x5d0] sm:$0xff]
        %v558 = vld [vmem:[#allocation2 + $0x5d8] sm:$0xf]
        %v559 = vld [vmem:[#allocation2 + $0x5dc] sm:$0xff]
        %v560 = vld [vmem:[#allocation2 + $0x5e4] sm:$0xf]
        %v561 = vld [vmem:[#allocation2 + $0x5e8] sm:$0xff]
        %v562 = vld [vmem:[#allocation2 + $0x5f0] sm:$0xf]
        %v563 = vld [vmem:[#allocation2 + $0x5f4] sm:$0xff]
        %v564 = vld [vmem:[#allocation2 + $0x5fc] sm:$0xf]
        %v565 = vld [vmem:[%s2] sm:$0x7]
        %v567 = vlaneseq
        %v568 = vshrl.u32 %v567, 7
        %v569 = vsub.s32 0, %v568
        %v570 = vrot.slane %v565, %v569
        %v571 = vlaneseq
        %v572 = vshrl.u32 %v571, 7
        %v573 = vsub.s32 1, %v572
        %v574 = vrot.slane %v565, %v573
        %v575 = vlaneseq
        %v576 = vshrl.u32 %v575, 7
        %v577 = vsub.s32 2, %v576
        %v578 = vrot.slane %v565, %v577
        %v838 = vunpack.c.l.b16 %v309
        %v839 = vunpack.c.h.b16 %v309
        %v840 = vunpack.c.l.b16 %v310
        %v841 = vunpack.c.l.b16 %v311
        %v842 = vunpack.c.h.b16 %v311
        %v843 = vunpack.c.l.b16 %v312
        %v844 = vunpack.c.l.b16 %v313
        %v845 = vunpack.c.h.b16 %v313
        %v846 = vunpack.c.l.b16 %v314
        %v847 = vunpack.c.l.b16 %v315
        %v848 = vunpack.c.h.b16 %v315
        %v849 = vunpack.c.l.b16 %v316
        %v850 = vunpack.c.l.b16 %v317
        %v851 = vunpack.c.h.b16 %v317
        %v852 = vunpack.c.l.b16 %v318
        %v853 = vunpack.c.l.b16 %v319
        %v854 = vunpack.c.h.b16 %v319
        %v855 = vunpack.c.l.b16 %v320
        %v856 = vunpack.c.l.b16 %v321
        %v857 = vunpack.c.h.b16 %v321
        %v858 = vunpack.c.l.b16 %v322
        %v859 = vunpack.c.l.b16 %v323
        %v860 = vunpack.c.h.b16 %v323
        %v861 = vunpack.c.l.b16 %v324
        %v862 = vunpack.c.l.b16 %v325
        %v863 = vunpack.c.h.b16 %v325
        %v864 = vunpack.c.l.b16 %v326
        %v865 = vunpack.c.l.b16 %v327
        %v866 = vunpack.c.h.b16 %v327
        %v867 = vunpack.c.l.b16 %v328
        %v868 = vunpack.c.l.b16 %v329
        %v869 = vunpack.c.h.b16 %v329
        %v870 = vunpack.c.l.b16 %v330
        %v871 = vunpack.c.l.b16 %v331
        %v872 = vunpack.c.h.b16 %v331
        %v873 = vunpack.c.l.b16 %v332
        %v874 = vunpack.c.l.b16 %v333
        %v875 = vunpack.c.h.b16 %v333
        %v876 = vunpack.c.l.b16 %v334
        %v877 = vunpack.c.l.b16 %v335
        %v878 = vunpack.c.h.b16 %v335
        %v879 = vunpack.c.l.b16 %v336
        %v880 = vunpack.c.l.b16 %v337
        %v881 = vunpack.c.h.b16 %v337
        %v882 = vunpack.c.l.b16 %v338
        %v883 = vunpack.c.l.b16 %v339
        %v884 = vunpack.c.h.b16 %v339
        %v885 = vunpack.c.l.b16 %v340
        %v886 = vunpack.c.l.b16 %v341
        %v887 = vunpack.c.h.b16 %v341
        %v888 = vunpack.c.l.b16 %v342
        %v889 = vunpack.c.l.b16 %v343
        %v890 = vunpack.c.h.b16 %v343
        %v891 = vunpack.c.l.b16 %v344
        %v892 = vunpack.c.l.b16 %v345
        %v893 = vunpack.c.h.b16 %v345
        %v894 = vunpack.c.l.b16 %v346
        %v895 = vunpack.c.l.b16 %v347
        %v896 = vunpack.c.h.b16 %v347
        %v897 = vunpack.c.l.b16 %v348
        %v898 = vunpack.c.l.b16 %v349
        %v899 = vunpack.c.h.b16 %v349
        %v900 = vunpack.c.l.b16 %v350
        %v901 = vunpack.c.l.b16 %v351
        %v902 = vunpack.c.h.b16 %v351
        %v903 = vunpack.c.l.b16 %v352
        %v904 = vunpack.c.l.b16 %v353
        %v905 = vunpack.c.h.b16 %v353
        %v906 = vunpack.c.l.b16 %v354
        %v907 = vunpack.c.l.b16 %v355
        %v908 = vunpack.c.h.b16 %v355
        %v909 = vunpack.c.l.b16 %v356
        %v910 = vunpack.c.l.b16 %v357
        %v911 = vunpack.c.h.b16 %v357
        %v912 = vunpack.c.l.b16 %v358
        %v913 = vunpack.c.l.b16 %v359
        %v914 = vunpack.c.h.b16 %v359
        %v915 = vunpack.c.l.b16 %v360
        %v916 = vunpack.c.l.b16 %v361
        %v917 = vunpack.c.h.b16 %v361
        %v918 = vunpack.c.l.b16 %v362
        %v919 = vunpack.c.l.b16 %v363
        %v920 = vunpack.c.h.b16 %v363
        %v921 = vunpack.c.l.b16 %v364
        %v922 = vunpack.c.l.b16 %v365
        %v923 = vunpack.c.h.b16 %v365
        %v924 = vunpack.c.l.b16 %v366
        %v925 = vunpack.c.l.b16 %v367
        %v926 = vunpack.c.h.b16 %v367
        %v927 = vunpack.c.l.b16 %v368
        %v928 = vunpack.c.l.b16 %v369
        %v929 = vunpack.c.h.b16 %v369
        %v930 = vunpack.c.l.b16 %v370
        %v931 = vunpack.c.l.b16 %v371
        %v932 = vunpack.c.h.b16 %v371
        %v933 = vunpack.c.l.b16 %v372
        %v934 = vunpack.c.l.b16 %v373
        %v935 = vunpack.c.h.b16 %v373
        %v936 = vunpack.c.l.b16 %v374
        %v937 = vunpack.c.l.b16 %v375
        %v938 = vunpack.c.h.b16 %v375
        %v939 = vunpack.c.l.b16 %v376
        %v940 = vunpack.c.l.b16 %v377
        %v941 = vunpack.c.h.b16 %v377
        %v942 = vunpack.c.l.b16 %v378
        %v943 = vunpack.c.l.b16 %v379
        %v944 = vunpack.c.h.b16 %v379
        %v945 = vunpack.c.l.b16 %v380
        %v946 = vunpack.c.l.b16 %v381
        %v947 = vunpack.c.h.b16 %v381
        %v948 = vunpack.c.l.b16 %v382
        %v949 = vunpack.c.l.b16 %v383
        %v950 = vunpack.c.h.b16 %v383
        %v951 = vunpack.c.l.b16 %v384
        %v952 = vunpack.c.l.b16 %v385
        %v953 = vunpack.c.h.b16 %v385
        %v954 = vunpack.c.l.b16 %v386
        %v955 = vunpack.c.l.b16 %v387
        %v956 = vunpack.c.h.b16 %v387
        %v957 = vunpack.c.l.b16 %v388
        %v958 = vunpack.c.l.b16 %v389
        %v959 = vunpack.c.h.b16 %v389
        %v960 = vunpack.c.l.b16 %v390
        %v961 = vunpack.c.l.b16 %v391
        %v962 = vunpack.c.h.b16 %v391
        %v963 = vunpack.c.l.b16 %v392
        %v964 = vunpack.c.l.b16 %v393
        %v965 = vunpack.c.h.b16 %v393
        %v966 = vunpack.c.l.b16 %v394
        %v967 = vunpack.c.l.b16 %v395
        %v968 = vunpack.c.h.b16 %v395
        %v969 = vunpack.c.l.b16 %v396
        %v970 = vunpack.c.l.b16 %v397
        %v971 = vunpack.c.h.b16 %v397
        %v972 = vunpack.c.l.b16 %v398
        %v973 = vunpack.c.l.b16 %v399
        %v974 = vunpack.c.h.b16 %v399
        %v975 = vunpack.c.l.b16 %v400
        %v976 = vunpack.c.l.b16 %v401
        %v977 = vunpack.c.h.b16 %v401
        %v978 = vunpack.c.l.b16 %v402
        %v979 = vunpack.c.l.b16 %v403
        %v980 = vunpack.c.h.b16 %v403
        %v981 = vunpack.c.l.b16 %v404
        %v982 = vunpack.c.l.b16 %v405
        %v983 = vunpack.c.h.b16 %v405
        %v984 = vunpack.c.l.b16 %v406
        %v985 = vunpack.c.l.b16 %v407
        %v986 = vunpack.c.h.b16 %v407
        %v987 = vunpack.c.l.b16 %v408
        %v988 = vunpack.c.l.b16 %v409
        %v989 = vunpack.c.h.b16 %v409
        %v990 = vunpack.c.l.b16 %v410
        %v991 = vunpack.c.l.b16 %v411
        %v992 = vunpack.c.h.b16 %v411
        %v993 = vunpack.c.l.b16 %v412
        %v994 = vunpack.c.l.b16 %v413
        %v995 = vunpack.c.h.b16 %v413
        %v996 = vunpack.c.l.b16 %v414
        %v997 = vunpack.c.l.b16 %v415
        %v998 = vunpack.c.h.b16 %v415
        %v999 = vunpack.c.l.b16 %v416
        %v1000 = vunpack.c.l.b16 %v417
        %v1001 = vunpack.c.h.b16 %v417
        %v1002 = vunpack.c.l.b16 %v418
        %v1003 = vunpack.c.l.b16 %v419
        %v1004 = vunpack.c.h.b16 %v419
        %v1005 = vunpack.c.l.b16 %v420
        %v1006 = vunpack.c.l.b16 %v421
        %v1007 = vunpack.c.h.b16 %v421
        %v1008 = vunpack.c.l.b16 %v422
        %v1009 = vunpack.c.l.b16 %v423
        %v1010 = vunpack.c.h.b16 %v423
        %v1011 = vunpack.c.l.b16 %v424
        %v1012 = vunpack.c.l.b16 %v425
        %v1013 = vunpack.c.h.b16 %v425
        %v1014 = vunpack.c.l.b16 %v426
        %v1015 = vunpack.c.l.b16 %v427
        %v1016 = vunpack.c.h.b16 %v427
        %v1017 = vunpack.c.l.b16 %v428
        %v1018 = vunpack.c.l.b16 %v429
        %v1019 = vunpack.c.h.b16 %v429
        %v1020 = vunpack.c.l.b16 %v430
        %v1021 = vunpack.c.l.b16 %v431
        %v1022 = vunpack.c.h.b16 %v431
        %v1023 = vunpack.c.l.b16 %v432
        %v1024 = vunpack.c.l.b16 %v433
        %v1025 = vunpack.c.h.b16 %v433
        %v1026 = vunpack.c.l.b16 %v434
        %v1027 = vunpack.c.l.b16 %v435
        %v1028 = vunpack.c.h.b16 %v435
        %v1029 = vunpack.c.l.b16 %v436
        %v1030 = vunpack.c.l.b16 %v437
        %v1031 = vunpack.c.h.b16 %v437
        %v1032 = vunpack.c.l.b16 %v438
        %v1033 = vunpack.c.l.b16 %v439
        %v1034 = vunpack.c.h.b16 %v439
        %v1035 = vunpack.c.l.b16 %v440
        %v1036 = vunpack.c.l.b16 %v441
        %v1037 = vunpack.c.h.b16 %v441
        %v1038 = vunpack.c.l.b16 %v442
        %v1039 = vunpack.c.l.b16 %v443
        %v1040 = vunpack.c.h.b16 %v443
        %v1041 = vunpack.c.l.b16 %v444
        %v1042 = vunpack.c.l.b16 %v445
        %v1043 = vunpack.c.h.b16 %v445
        %v1044 = vunpack.c.l.b16 %v446
        %v1045 = vunpack.c.l.b16 %v447
        %v1046 = vunpack.c.h.b16 %v447
        %v1047 = vunpack.c.l.b16 %v448
        %v1048 = vunpack.c.l.b16 %v449
        %v1049 = vunpack.c.h.b16 %v449
        %v1050 = vunpack.c.l.b16 %v450
        %v1051 = vunpack.c.l.b16 %v451
        %v1052 = vunpack.c.h.b16 %v451
        %v1053 = vunpack.c.l.b16 %v452
        %v1054 = vunpack.c.l.b16 %v453
        %v1055 = vunpack.c.h.b16 %v453
        %v1056 = vunpack.c.l.b16 %v454
        %v1057 = vunpack.c.l.b16 %v455
        %v1058 = vunpack.c.h.b16 %v455
        %v1059 = vunpack.c.l.b16 %v456
        %v1060 = vunpack.c.l.b16 %v457
        %v1061 = vunpack.c.h.b16 %v457
        %v1062 = vunpack.c.l.b16 %v458
        %v1063 = vunpack.c.l.b16 %v459
        %v1064 = vunpack.c.h.b16 %v459
        %v1065 = vunpack.c.l.b16 %v460
        %v1066 = vunpack.c.l.b16 %v461
        %v1067 = vunpack.c.h.b16 %v461
        %v1068 = vunpack.c.l.b16 %v462
        %v1069 = vunpack.c.l.b16 %v463
        %v1070 = vunpack.c.h.b16 %v463
        %v1071 = vunpack.c.l.b16 %v464
        %v1072 = vunpack.c.l.b16 %v465
        %v1073 = vunpack.c.h.b16 %v465
        %v1074 = vunpack.c.l.b16 %v466
        %v1075 = vunpack.c.l.b16 %v467
        %v1076 = vunpack.c.h.b16 %v467
        %v1077 = vunpack.c.l.b16 %v468
        %v1078 = vunpack.c.l.b16 %v469
        %v1079 = vunpack.c.h.b16 %v469
        %v1080 = vunpack.c.l.b16 %v470
        %v1081 = vunpack.c.l.b16 %v471
        %v1082 = vunpack.c.h.b16 %v471
        %v1083 = vunpack.c.l.b16 %v472
        %v1084 = vunpack.c.l.b16 %v473
        %v1085 = vunpack.c.h.b16 %v473
        %v1086 = vunpack.c.l.b16 %v474
        %v1087 = vunpack.c.l.b16 %v475
        %v1088 = vunpack.c.h.b16 %v475
        %v1089 = vunpack.c.l.b16 %v476
        %v1090 = vunpack.c.l.b16 %v477
        %v1091 = vunpack.c.h.b16 %v477
        %v1092 = vunpack.c.l.b16 %v478
        %v1093 = vunpack.c.l.b16 %v479
        %v1094 = vunpack.c.h.b16 %v479
        %v1095 = vunpack.c.l.b16 %v480
        %v1096 = vunpack.c.l.b16 %v481
        %v1097 = vunpack.c.h.b16 %v481
        %v1098 = vunpack.c.l.b16 %v482
        %v1099 = vunpack.c.l.b16 %v483
        %v1100 = vunpack.c.h.b16 %v483
        %v1101 = vunpack.c.l.b16 %v484
        %v1102 = vunpack.c.l.b16 %v485
        %v1103 = vunpack.c.h.b16 %v485
        %v1104 = vunpack.c.l.b16 %v486
        %v1105 = vunpack.c.l.b16 %v487
        %v1106 = vunpack.c.h.b16 %v487
        %v1107 = vunpack.c.l.b16 %v488
        %v1108 = vunpack.c.l.b16 %v489
        %v1109 = vunpack.c.h.b16 %v489
        %v1110 = vunpack.c.l.b16 %v490
        %v1111 = vunpack.c.l.b16 %v491
        %v1112 = vunpack.c.h.b16 %v491
        %v1113 = vunpack.c.l.b16 %v492
        %v1114 = vunpack.c.l.b16 %v493
        %v1115 = vunpack.c.h.b16 %v493
        %v1116 = vunpack.c.l.b16 %v494
        %v1117 = vunpack.c.l.b16 %v495
        %v1118 = vunpack.c.h.b16 %v495
        %v1119 = vunpack.c.l.b16 %v496
        %v1120 = vunpack.c.l.b16 %v497
        %v1121 = vunpack.c.h.b16 %v497
        %v1122 = vunpack.c.l.b16 %v498
        %v1123 = vunpack.c.l.b16 %v499
        %v1124 = vunpack.c.h.b16 %v499
        %v1125 = vunpack.c.l.b16 %v500
        %v1126 = vunpack.c.l.b16 %v501
        %v1127 = vunpack.c.h.b16 %v501
        %v1128 = vunpack.c.l.b16 %v502
        %v1129 = vunpack.c.l.b16 %v503
        %v1130 = vunpack.c.h.b16 %v503
        %v1131 = vunpack.c.l.b16 %v504
        %v1132 = vunpack.c.l.b16 %v505
        %v1133 = vunpack.c.h.b16 %v505
        %v1134 = vunpack.c.l.b16 %v506
        %v1135 = vunpack.c.l.b16 %v507
        %v1136 = vunpack.c.h.b16 %v507
        %v1137 = vunpack.c.l.b16 %v508
        %v1138 = vunpack.c.l.b16 %v509
        %v1139 = vunpack.c.h.b16 %v509
        %v1140 = vunpack.c.l.b16 %v510
        %v1141 = vunpack.c.l.b16 %v511
        %v1142 = vunpack.c.h.b16 %v511
        %v1143 = vunpack.c.l.b16 %v512
        %v1144 = vunpack.c.l.b16 %v513
        %v1145 = vunpack.c.h.b16 %v513
        %v1146 = vunpack.c.l.b16 %v514
        %v1147 = vunpack.c.l.b16 %v515
        %v1148 = vunpack.c.h.b16 %v515
        %v1149 = vunpack.c.l.b16 %v516
        %v1150 = vunpack.c.l.b16 %v517
        %v1151 = vunpack.c.h.b16 %v517
        %v1152 = vunpack.c.l.b16 %v518
        %v1153 = vunpack.c.l.b16 %v519
        %v1154 = vunpack.c.h.b16 %v519
        %v1155 = vunpack.c.l.b16 %v520
        %v1156 = vunpack.c.l.b16 %v521
        %v1157 = vunpack.c.h.b16 %v521
        %v1158 = vunpack.c.l.b16 %v522
        %v1159 = vunpack.c.l.b16 %v523
        %v1160 = vunpack.c.h.b16 %v523
        %v1161 = vunpack.c.l.b16 %v524
        %v1162 = vunpack.c.l.b16 %v525
        %v1163 = vunpack.c.h.b16 %v525
        %v1164 = vunpack.c.l.b16 %v526
        %v1165 = vunpack.c.l.b16 %v527
        %v1166 = vunpack.c.h.b16 %v527
        %v1167 = vunpack.c.l.b16 %v528
        %v1168 = vunpack.c.l.b16 %v529
        %v1169 = vunpack.c.h.b16 %v529
        %v1170 = vunpack.c.l.b16 %v530
        %v1171 = vunpack.c.l.b16 %v531
        %v1172 = vunpack.c.h.b16 %v531
        %v1173 = vunpack.c.l.b16 %v532
        %v1174 = vunpack.c.l.b16 %v533
        %v1175 = vunpack.c.h.b16 %v533
        %v1176 = vunpack.c.l.b16 %v534
        %v1177 = vunpack.c.l.b16 %v535
        %v1178 = vunpack.c.h.b16 %v535
        %v1179 = vunpack.c.l.b16 %v536
        %v1180 = vunpack.c.l.b16 %v537
        %v1181 = vunpack.c.h.b16 %v537
        %v1182 = vunpack.c.l.b16 %v538
        %v1183 = vunpack.c.l.b16 %v539
        %v1184 = vunpack.c.h.b16 %v539
        %v1185 = vunpack.c.l.b16 %v540
        %v1186 = vunpack.c.l.b16 %v541
        %v1187 = vunpack.c.h.b16 %v541
        %v1188 = vunpack.c.l.b16 %v542
        %v1189 = vunpack.c.l.b16 %v543
        %v1190 = vunpack.c.h.b16 %v543
        %v1191 = vunpack.c.l.b16 %v544
        %v1192 = vunpack.c.l.b16 %v545
        %v1193 = vunpack.c.h.b16 %v545
        %v1194 = vunpack.c.l.b16 %v546
        %v1195 = vunpack.c.l.b16 %v547
        %v1196 = vunpack.c.h.b16 %v547
        %v1197 = vunpack.c.l.b16 %v548
        %v1198 = vunpack.c.l.b16 %v549
        %v1199 = vunpack.c.h.b16 %v549
        %v1200 = vunpack.c.l.b16 %v550
        %v1201 = vunpack.c.l.b16 %v551
        %v1202 = vunpack.c.h.b16 %v551
        %v1203 = vunpack.c.l.b16 %v552
        %v1204 = vunpack.c.l.b16 %v553
        %v1205 = vunpack.c.h.b16 %v553
        %v1206 = vunpack.c.l.b16 %v554
        %v1207 = vunpack.c.l.b16 %v555
        %v1208 = vunpack.c.h.b16 %v555
        %v1209 = vunpack.c.l.b16 %v556
        %v1210 = vunpack.c.l.b16 %v557
        %v1211 = vunpack.c.h.b16 %v557
        %v1212 = vunpack.c.l.b16 %v558
        %v1213 = vunpack.c.l.b16 %v559
        %v1214 = vunpack.c.h.b16 %v559
        %v1215 = vunpack.c.l.b16 %v560
        %v1216 = vunpack.c.l.b16 %v561
        %v1217 = vunpack.c.h.b16 %v561
        %v1218 = vunpack.c.l.b16 %v562
        %v1219 = vunpack.c.l.b16 %v563
        %v1220 = vunpack.c.h.b16 %v563
        %v1221 = vunpack.c.l.b16 %v564
        %v1222 = vpack.c.b16 %v841, %v838
        %v1223 = vpack.c.b16 %v842, %v839
        %v1224 = vpack.c.b16 %v843, %v840
        %v1225 = vpack.c.b16 %v847, %v844
        %v1226 = vpack.c.b16 %v848, %v845
        %v1227 = vpack.c.b16 %v849, %v846
        %v1228 = vpack.c.b16 %v853, %v850
        %v1229 = vpack.c.b16 %v854, %v851
        %v1230 = vpack.c.b16 %v855, %v852
        %v1231 = vpack.c.b16 %v859, %v856
        %v1232 = vpack.c.b16 %v860, %v857
        %v1233 = vpack.c.b16 %v861, %v858
        %v1234 = vpack.c.b16 %v865, %v862
        %v1235 = vpack.c.b16 %v866, %v863
        %v1236 = vpack.c.b16 %v867, %v864
        %v1237 = vpack.c.b16 %v871, %v868
        %v1238 = vpack.c.b16 %v872, %v869
        %v1239 = vpack.c.b16 %v873, %v870
        %v1240 = vpack.c.b16 %v877, %v874
        %v1241 = vpack.c.b16 %v878, %v875
        %v1242 = vpack.c.b16 %v879, %v876
        %v1243 = vpack.c.b16 %v883, %v880
        %v1244 = vpack.c.b16 %v884, %v881
        %v1245 = vpack.c.b16 %v885, %v882
        %v1246 = vpack.c.b16 %v889, %v886
        %v1247 = vpack.c.b16 %v890, %v887
        %v1248 = vpack.c.b16 %v891, %v888
        %v1249 = vpack.c.b16 %v895, %v892
        %v1250 = vpack.c.b16 %v896, %v893
        %v1251 = vpack.c.b16 %v897, %v894
        %v1252 = vpack.c.b16 %v901, %v898
        %v1253 = vpack.c.b16 %v902, %v899
        %v1254 = vpack.c.b16 %v903, %v900
        %v1255 = vpack.c.b16 %v907, %v904
        %v1256 = vpack.c.b16 %v908, %v905
        %v1257 = vpack.c.b16 %v909, %v906
        %v1258 = vpack.c.b16 %v913, %v910
        %v1259 = vpack.c.b16 %v914, %v911
        %v1260 = vpack.c.b16 %v915, %v912
        %v1261 = vpack.c.b16 %v919, %v916
        %v1262 = vpack.c.b16 %v920, %v917
        %v1263 = vpack.c.b16 %v921, %v918
        %v1264 = vpack.c.b16 %v925, %v922
        %v1265 = vpack.c.b16 %v926, %v923
        %v1266 = vpack.c.b16 %v927, %v924
        %v1267 = vpack.c.b16 %v931, %v928
        %v1268 = vpack.c.b16 %v932, %v929
        %v1269 = vpack.c.b16 %v933, %v930
        %v1270 = vpack.c.b16 %v937, %v934
        %v1271 = vpack.c.b16 %v938, %v935
        %v1272 = vpack.c.b16 %v939, %v936
        %v1273 = vpack.c.b16 %v943, %v940
        %v1274 = vpack.c.b16 %v944, %v941
        %v1275 = vpack.c.b16 %v945, %v942
        %v1276 = vpack.c.b16 %v949, %v946
        %v1277 = vpack.c.b16 %v950, %v947
        %v1278 = vpack.c.b16 %v951, %v948
        %v1279 = vpack.c.b16 %v955, %v952
        %v1280 = vpack.c.b16 %v956, %v953
        %v1281 = vpack.c.b16 %v957, %v954
        %v1282 = vpack.c.b16 %v961, %v958
        %v1283 = vpack.c.b16 %v962, %v959
        %v1284 = vpack.c.b16 %v963, %v960
        %v1285 = vpack.c.b16 %v967, %v964
        %v1286 = vpack.c.b16 %v968, %v965
        %v1287 = vpack.c.b16 %v969, %v966
        %v1288 = vpack.c.b16 %v973, %v970
        %v1289 = vpack.c.b16 %v974, %v971
        %v1290 = vpack.c.b16 %v975, %v972
        %v1291 = vpack.c.b16 %v979, %v976
        %v1292 = vpack.c.b16 %v980, %v977
        %v1293 = vpack.c.b16 %v981, %v978
        %v1294 = vpack.c.b16 %v985, %v982
        %v1295 = vpack.c.b16 %v986, %v983
        %v1296 = vpack.c.b16 %v987, %v984
        %v1297 = vpack.c.b16 %v991, %v988
        %v1298 = vpack.c.b16 %v992, %v989
        %v1299 = vpack.c.b16 %v993, %v990
        %v1300 = vpack.c.b16 %v997, %v994
        %v1301 = vpack.c.b16 %v998, %v995
        %v1302 = vpack.c.b16 %v999, %v996
        %v1303 = vpack.c.b16 %v1003, %v1000
        %v1304 = vpack.c.b16 %v1004, %v1001
        %v1305 = vpack.c.b16 %v1005, %v1002
        %v1306 = vpack.c.b16 %v1009, %v1006
        %v1307 = vpack.c.b16 %v1010, %v1007
        %v1308 = vpack.c.b16 %v1011, %v1008
        %v1309 = vpack.c.b16 %v1015, %v1012
        %v1310 = vpack.c.b16 %v1016, %v1013
        %v1311 = vpack.c.b16 %v1017, %v1014
        %v1312 = vpack.c.b16 %v1021, %v1018
        %v1313 = vpack.c.b16 %v1022, %v1019
        %v1314 = vpack.c.b16 %v1023, %v1020
        %v1315 = vpack.c.b16 %v1027, %v1024
        %v1316 = vpack.c.b16 %v1028, %v1025
        %v1317 = vpack.c.b16 %v1029, %v1026
        %v1318 = vpack.c.b16 %v1033, %v1030
        %v1319 = vpack.c.b16 %v1034, %v1031
        %v1320 = vpack.c.b16 %v1035, %v1032
        %v1321 = vpack.c.b16 %v1039, %v1036
        %v1322 = vpack.c.b16 %v1040, %v1037
        %v1323 = vpack.c.b16 %v1041, %v1038
        %v1324 = vpack.c.b16 %v1045, %v1042
        %v1325 = vpack.c.b16 %v1046, %v1043
        %v1326 = vpack.c.b16 %v1047, %v1044
        %v1327 = vpack.c.b16 %v1051, %v1048
        %v1328 = vpack.c.b16 %v1052, %v1049
        %v1329 = vpack.c.b16 %v1053, %v1050
        %v1330 = vpack.c.b16 %v1057, %v1054
        %v1331 = vpack.c.b16 %v1058, %v1055
        %v1332 = vpack.c.b16 %v1059, %v1056
        %v1333 = vpack.c.b16 %v1063, %v1060
        %v1334 = vpack.c.b16 %v1064, %v1061
        %v1335 = vpack.c.b16 %v1065, %v1062
        %v1336 = vpack.c.b16 %v1069, %v1066
        %v1337 = vpack.c.b16 %v1070, %v1067
        %v1338 = vpack.c.b16 %v1071, %v1068
        %v1339 = vpack.c.b16 %v1075, %v1072
        %v1340 = vpack.c.b16 %v1076, %v1073
        %v1341 = vpack.c.b16 %v1077, %v1074
        %v1342 = vpack.c.b16 %v1081, %v1078
        %v1343 = vpack.c.b16 %v1082, %v1079
        %v1344 = vpack.c.b16 %v1083, %v1080
        %v1345 = vpack.c.b16 %v1087, %v1084
        %v1346 = vpack.c.b16 %v1088, %v1085
        %v1347 = vpack.c.b16 %v1089, %v1086
        %v1348 = vpack.c.b16 %v1093, %v1090
        %v1349 = vpack.c.b16 %v1094, %v1091
        %v1350 = vpack.c.b16 %v1095, %v1092
        %v1351 = vpack.c.b16 %v1099, %v1096
        %v1352 = vpack.c.b16 %v1100, %v1097
        %v1353 = vpack.c.b16 %v1101, %v1098
        %v1354 = vpack.c.b16 %v1105, %v1102
        %v1355 = vpack.c.b16 %v1106, %v1103
        %v1356 = vpack.c.b16 %v1107, %v1104
        %v1357 = vpack.c.b16 %v1111, %v1108
        %v1358 = vpack.c.b16 %v1112, %v1109
        %v1359 = vpack.c.b16 %v1113, %v1110
        %v1360 = vpack.c.b16 %v1117, %v1114
        %v1361 = vpack.c.b16 %v1118, %v1115
        %v1362 = vpack.c.b16 %v1119, %v1116
        %v1363 = vpack.c.b16 %v1123, %v1120
        %v1364 = vpack.c.b16 %v1124, %v1121
        %v1365 = vpack.c.b16 %v1125, %v1122
        %v1366 = vpack.c.b16 %v1129, %v1126
        %v1367 = vpack.c.b16 %v1130, %v1127
        %v1368 = vpack.c.b16 %v1131, %v1128
        %v1369 = vpack.c.b16 %v1135, %v1132
        %v1370 = vpack.c.b16 %v1136, %v1133
        %v1371 = vpack.c.b16 %v1137, %v1134
        %v1372 = vpack.c.b16 %v1141, %v1138
        %v1373 = vpack.c.b16 %v1142, %v1139
        %v1374 = vpack.c.b16 %v1143, %v1140
        %v1375 = vpack.c.b16 %v1147, %v1144
        %v1376 = vpack.c.b16 %v1148, %v1145
        %v1377 = vpack.c.b16 %v1149, %v1146
        %v1378 = vpack.c.b16 %v1153, %v1150
        %v1379 = vpack.c.b16 %v1154, %v1151
        %v1380 = vpack.c.b16 %v1155, %v1152
        %v1381 = vpack.c.b16 %v1159, %v1156
        %v1382 = vpack.c.b16 %v1160, %v1157
        %v1383 = vpack.c.b16 %v1161, %v1158
        %v1384 = vpack.c.b16 %v1165, %v1162
        %v1385 = vpack.c.b16 %v1166, %v1163
        %v1386 = vpack.c.b16 %v1167, %v1164
        %v1387 = vpack.c.b16 %v1171, %v1168
        %v1388 = vpack.c.b16 %v1172, %v1169
        %v1389 = vpack.c.b16 %v1173, %v1170
        %v1390 = vpack.c.b16 %v1177, %v1174
        %v1391 = vpack.c.b16 %v1178, %v1175
        %v1392 = vpack.c.b16 %v1179, %v1176
        %v1393 = vpack.c.b16 %v1183, %v1180
        %v1394 = vpack.c.b16 %v1184, %v1181
        %v1395 = vpack.c.b16 %v1185, %v1182
        %v1396 = vpack.c.b16 %v1189, %v1186
        %v1397 = vpack.c.b16 %v1190, %v1187
        %v1398 = vpack.c.b16 %v1191, %v1188
        %v1399 = vpack.c.b16 %v1195, %v1192
        %v1400 = vpack.c.b16 %v1196, %v1193
        %v1401 = vpack.c.b16 %v1197, %v1194
        %v1402 = vpack.c.b16 %v1201, %v1198
        %v1403 = vpack.c.b16 %v1202, %v1199
        %v1404 = vpack.c.b16 %v1203, %v1200
        %v1405 = vpack.c.b16 %v1207, %v1204
        %v1406 = vpack.c.b16 %v1208, %v1205
        %v1407 = vpack.c.b16 %v1209, %v1206
        %v1408 = vpack.c.b16 %v1213, %v1210
        %v1409 = vpack.c.b16 %v1214, %v1211
        %v1410 = vpack.c.b16 %v1215, %v1212
        %v1411 = vpack.c.b16 %v1219, %v1216
        %v1412 = vpack.c.b16 %v1220, %v1217
        %v1413 = vpack.c.b16 %v1221, %v1218
        %1606 = vmatprep.subr.bf16.mxu0 %v1223
        %1607 = vmatpush1.bf16.msra.mxu0 %v1222
        %1608 = vmatprep.subr.bf16.mxu0 %v1226
        %1609 = vmatpush1.bf16.msra.mxu0 %v1225
        %1610 = vmatprep.subr.bf16.mxu0 %v1229
        %1611 = vmatpush1.bf16.msra.mxu0 %v1228
        %1612 = vmatprep.subr.bf16.mxu0 %v1232
        %1613 = vmatpush1.bf16.msra.mxu0 %v1231
        %1614 = vmatprep.subr.bf16.mxu0 %v1235
        %1615 = vmatpush1.bf16.msra.mxu0 %v1234
        %1616 = vmatprep.subr.bf16.mxu0 %v1238
        %1617 = vmatpush1.bf16.msra.mxu0 %v1237
        %1618 = vmatprep.subr.bf16.mxu0 %v1241
        %1619 = vmatpush1.bf16.msra.mxu0 %v1240
        %1620 = vmatprep.subr.bf16.mxu0 %v1244
        %1621 = vmatpush1.bf16.msra.mxu0 %v1243
        %1622 = vmatprep.subr.bf16.mxu0 %v1247
        %1623 = vmatpush1.bf16.msra.mxu0 %v1246
        %1624 = vmatprep.subr.bf16.mxu0 %v1250
        %1625 = vmatpush1.bf16.msra.mxu0 %v1249
        %1626 = vmatprep.subr.bf16.mxu0 %v1253
        %1627 = vmatpush1.bf16.msra.mxu0 %v1252
        %1628 = vmatprep.subr.bf16.mxu0 %v1256
        %1629 = vmatpush1.bf16.msra.mxu0 %v1255
        %1630 = vmatprep.subr.bf16.mxu0 %v1259
        %1631 = vmatpush1.bf16.msra.mxu0 %v1258
        %1632 = vmatprep.subr.bf16.mxu0 %v1262
        %1633 = vmatpush1.bf16.msra.mxu0 %v1261
        %1634 = vmatprep.subr.bf16.mxu0 %v1265
        %1635 = vmatpush1.bf16.msra.mxu0 %v1264
        %1636 = vmatprep.subr.bf16.mxu0 %v1268
        %1637 = vmatpush1.bf16.msra.mxu0 %v1267
        %1638 = vmatprep.mubr.bf16.mxu0 %v302
        %1639 = vmatmul.mubr.bf16.gmra.mrb[0].mxu0 %v301
        %v1640 = vpop.f32.mrb[0].mxu0
        %v1641 = vadd.f32 %v570, %v1640
        %v1642 = vpop.f32.mrb[0].mxu0
        %v1643 = vadd.f32 %v574, %v1642
        %v1644 = vpop.f32.mrb[0].mxu0
        %v1645 = vpop.f32.mrb[0].mxu0
        %1646 = vdwg.mxu0
        %1647 = vmatprep.subr.bf16.mxu0 %v1271
        %1648 = vmatpush1.bf16.msra.mxu0 %v1270
        %1649 = vmatprep.subr.bf16.mxu0 %v1274
        %1650 = vmatpush1.bf16.msra.mxu0 %v1273
        %1651 = vmatprep.subr.bf16.mxu0 %v1277
        %1652 = vmatpush1.bf16.msra.mxu0 %v1276
        %1653 = vmatprep.subr.bf16.mxu0 %v1280
        %1654 = vmatpush1.bf16.msra.mxu0 %v1279
        %1655 = vmatprep.subr.bf16.mxu0 %v1283
        %1656 = vmatpush1.bf16.msra.mxu0 %v1282
        %1657 = vmatprep.subr.bf16.mxu0 %v1286
        %1658 = vmatpush1.bf16.msra.mxu0 %v1285
        %1659 = vmatprep.subr.bf16.mxu0 %v1289
        %1660 = vmatpush1.bf16.msra.mxu0 %v1288
        %1661 = vmatprep.subr.bf16.mxu0 %v1292
        %1662 = vmatpush1.bf16.msra.mxu0 %v1291
        %1663 = vmatprep.subr.bf16.mxu0 %v1295
        %1664 = vmatpush1.bf16.msra.mxu0 %v1294
        %1665 = vmatprep.subr.bf16.mxu0 %v1298
        %1666 = vmatpush1.bf16.msra.mxu0 %v1297
        %1667 = vmatprep.subr.bf16.mxu0 %v1301
        %1668 = vmatpush1.bf16.msra.mxu0 %v1300
        %1669 = vmatprep.subr.bf16.mxu0 %v1304
        %1670 = vmatpush1.bf16.msra.mxu0 %v1303
        %1671 = vmatprep.subr.bf16.mxu0 %v1307
        %1672 = vmatpush1.bf16.msra.mxu0 %v1306
        %1673 = vmatprep.subr.bf16.mxu0 %v1310
        %1674 = vmatpush1.bf16.msra.mxu0 %v1309
        %1675 = vmatprep.subr.bf16.mxu0 %v1313
        %1676 = vmatpush1.bf16.msra.mxu0 %v1312
        %1677 = vmatprep.subr.bf16.mxu0 %v1316
        %1678 = vmatpush1.bf16.msra.mxu0 %v1315
        %1679 = vmatprep.mubr.bf16.mxu0 %v304
        %1680 = vmatmul.mubr.bf16.gmra.mrb[0].mxu0 %v303
        %v1681 = vpop.f32.mrb[0].mxu0
        %v1682 = vadd.f32 %v1641, %v1681
        %v1683 = vpop.f32.mrb[0].mxu0
        %v1684 = vadd.f32 %v1643, %v1683
        %v1685 = vpop.f32.mrb[0].mxu0
        %v1686 = vpop.f32.mrb[0].mxu0
        %1687 = vdwg.mxu0
        %1688 = vmatprep.subr.bf16.mxu0 %v1319
        %1689 = vmatpush1.bf16.msra.mxu0 %v1318
        %1690 = vmatprep.subr.bf16.mxu0 %v1322
        %1691 = vmatpush1.bf16.msra.mxu0 %v1321
        %1692 = vmatprep.subr.bf16.mxu0 %v1325
        %1693 = vmatpush1.bf16.msra.mxu0 %v1324
        %1694 = vmatprep.subr.bf16.mxu0 %v1328
        %1695 = vmatpush1.bf16.msra.mxu0 %v1327
        %1696 = vmatprep.subr.bf16.mxu0 %v1331
        %1697 = vmatpush1.bf16.msra.mxu0 %v1330
        %1698 = vmatprep.subr.bf16.mxu0 %v1334
        %1699 = vmatpush1.bf16.msra.mxu0 %v1333
        %1700 = vmatprep.subr.bf16.mxu0 %v1337
        %1701 = vmatpush1.bf16.msra.mxu0 %v1336
        %1702 = vmatprep.subr.bf16.mxu0 %v1340
        %1703 = vmatpush1.bf16.msra.mxu0 %v1339
        %1704 = vmatprep.subr.bf16.mxu0 %v1343
        %1705 = vmatpush1.bf16.msra.mxu0 %v1342
        %1706 = vmatprep.subr.bf16.mxu0 %v1346
        %1707 = vmatpush1.bf16.msra.mxu0 %v1345
        %1708 = vmatprep.subr.bf16.mxu0 %v1349
        %1709 = vmatpush1.bf16.msra.mxu0 %v1348
        %1710 = vmatprep.subr.bf16.mxu0 %v1352
        %1711 = vmatpush1.bf16.msra.mxu0 %v1351
        %1712 = vmatprep.subr.bf16.mxu0 %v1355
        %1713 = vmatpush1.bf16.msra.mxu0 %v1354
        %1714 = vmatprep.subr.bf16.mxu0 %v1358
        %1715 = vmatpush1.bf16.msra.mxu0 %v1357
        %1716 = vmatprep.subr.bf16.mxu0 %v1361
        %1717 = vmatpush1.bf16.msra.mxu0 %v1360
        %1718 = vmatprep.subr.bf16.mxu0 %v1364
        %1719 = vmatpush1.bf16.msra.mxu0 %v1363
        %1720 = vmatprep.mubr.bf16.mxu0 %v306
        %1721 = vmatmul.mubr.bf16.gmra.mrb[0].mxu0 %v305
        %v1722 = vpop.f32.mrb[0].mxu0
        %v1723 = vadd.f32 %v1682, %v1722
        %v1724 = vpop.f32.mrb[0].mxu0
        %v1725 = vadd.f32 %v1684, %v1724
        %v1726 = vpop.f32.mrb[0].mxu0
        %v1727 = vpop.f32.mrb[0].mxu0
        %1728 = vdwg.mxu0
        %1729 = vmatprep.subr.bf16.mxu0 %v1367
        %1730 = vmatpush1.bf16.msra.mxu0 %v1366
        %1731 = vmatprep.subr.bf16.mxu0 %v1370
        %1732 = vmatpush1.bf16.msra.mxu0 %v1369
        %1733 = vmatprep.subr.bf16.mxu0 %v1373
        %1734 = vmatpush1.bf16.msra.mxu0 %v1372
        %1735 = vmatprep.subr.bf16.mxu0 %v1376
        %1736 = vmatpush1.bf16.msra.mxu0 %v1375
        %1737 = vmatprep.subr.bf16.mxu0 %v1379
        %1738 = vmatpush1.bf16.msra.mxu0 %v1378
        %1739 = vmatprep.subr.bf16.mxu0 %v1382
        %1740 = vmatpush1.bf16.msra.mxu0 %v1381
        %1741 = vmatprep.subr.bf16.mxu0 %v1385
        %1742 = vmatpush1.bf16.msra.mxu0 %v1384
        %1743 = vmatprep.subr.bf16.mxu0 %v1388
        %1744 = vmatpush1.bf16.msra.mxu0 %v1387
        %1745 = vmatprep.subr.bf16.mxu0 %v1391
        %1746 = vmatpush1.bf16.msra.mxu0 %v1390
        %1747 = vmatprep.subr.bf16.mxu0 %v1394
        %1748 = vmatpush1.bf16.msra.mxu0 %v1393
        %1749 = vmatprep.subr.bf16.mxu0 %v1397
        %1750 = vmatpush1.bf16.msra.mxu0 %v1396
        %1751 = vmatprep.subr.bf16.mxu0 %v1400
        %1752 = vmatpush1.bf16.msra.mxu0 %v1399
        %1753 = vmatprep.subr.bf16.mxu0 %v1403
        %1754 = vmatpush1.bf16.msra.mxu0 %v1402
        %1755 = vmatprep.subr.bf16.mxu0 %v1406
        %1756 = vmatpush1.bf16.msra.mxu0 %v1405
        %1757 = vmatprep.subr.bf16.mxu0 %v1409
        %1758 = vmatpush1.bf16.msra.mxu0 %v1408
        %1759 = vmatprep.subr.bf16.mxu0 %v1412
        %1760 = vmatpush1.bf16.msra.mxu0 %v1411
        %1761 = vmatprep.mubr.bf16.mxu0 %v308
        %1762 = vmatmul.mubr.bf16.gmra.mrb[0].mxu0 %v307
        %v1763 = vpop.f32.mrb[0].mxu0
        %v1764 = vadd.f32 %v1723, %v1763
        %v1765 = vpop.f32.mrb[0].mxu0
        %v1766 = vadd.f32 %v1725, %v1765
        %v1767 = vpop.f32.mrb[0].mxu0
        %v1768 = vpop.f32.mrb[0].mxu0
        %1769 = vdwg.mxu0
        %1770 = vmatprep.subr.bf16.mxu0 0
        %1771 = vmatpush1.bf16.msra.mxu0 %v1224
        %1772 = vmatprep.subr.bf16.mxu0 0
        %1773 = vmatpush1.bf16.msra.mxu0 %v1227
        %1774 = vmatprep.subr.bf16.mxu0 0
        %1775 = vmatpush1.bf16.msra.mxu0 %v1230
        %1776 = vmatprep.subr.bf16.mxu0 0
        %1777 = vmatpush1.bf16.msra.mxu0 %v1233
        %1778 = vmatprep.subr.bf16.mxu0 0
        %1779 = vmatpush1.bf16.msra.mxu0 %v1236
        %1780 = vmatprep.subr.bf16.mxu0 0
        %1781 = vmatpush1.bf16.msra.mxu0 %v1239
        %1782 = vmatprep.subr.bf16.mxu0 0
        %1783 = vmatpush1.bf16.msra.mxu0 %v1242
        %1784 = vmatprep.subr.bf16.mxu0 0
        %1785 = vmatpush1.bf16.msra.mxu0 %v1245
        %1786 = vmatprep.subr.bf16.mxu0 0
        %1787 = vmatpush1.bf16.msra.mxu0 %v1248
        %1788 = vmatprep.subr.bf16.mxu0 0
        %1789 = vmatpush1.bf16.msra.mxu0 %v1251
        %1790 = vmatprep.subr.bf16.mxu0 0
        %1791 = vmatpush1.bf16.msra.mxu0 %v1254
        %1792 = vmatprep.subr.bf16.mxu0 0
        %1793 = vmatpush1.bf16.msra.mxu0 %v1257
        %1794 = vmatprep.subr.bf16.mxu0 0
        %1795 = vmatpush1.bf16.msra.mxu0 %v1260
        %1796 = vmatprep.subr.bf16.mxu0 0
        %1797 = vmatpush1.bf16.msra.mxu0 %v1263
        %1798 = vmatprep.subr.bf16.mxu0 0
        %1799 = vmatpush1.bf16.msra.mxu0 %v1266
        %1800 = vmatprep.subr.bf16.mxu0 0
        %1801 = vmatpush1.bf16.msra.mxu0 %v1269
        %1802 = vmatprep.mubr.bf16.mxu0 %v302
        %1803 = vmatmul.mubr.bf16.gmra.mrb[0].mxu0 %v301
        %v1804 = vpop.f32.mrb[0].mxu0
        %v1805 = vadd.f32 %v578, %v1804
        %v1806 = vpop.f32.mrb[0].mxu0
        %v1807 = vpop.f32.mrb[0].mxu0
        %v1808 = vpop.f32.mrb[0].mxu0
        %1809 = vdwg.mxu0
        %1810 = vmatprep.subr.bf16.mxu0 0
        %1811 = vmatpush1.bf16.msra.mxu0 %v1272
        %1812 = vmatprep.subr.bf16.mxu0 0
        %1813 = vmatpush1.bf16.msra.mxu0 %v1275
        %1814 = vmatprep.subr.bf16.mxu0 0
        %1815 = vmatpush1.bf16.msra.mxu0 %v1278
        %1816 = vmatprep.subr.bf16.mxu0 0
        %1817 = vmatpush1.bf16.msra.mxu0 %v1281
        %1818 = vmatprep.subr.bf16.mxu0 0
        %1819 = vmatpush1.bf16.msra.mxu0 %v1284
        %1820 = vmatprep.subr.bf16.mxu0 0
        %1821 = vmatpush1.bf16.msra.mxu0 %v1287
        %1822 = vmatprep.subr.bf16.mxu0 0
        %1823 = vmatpush1.bf16.msra.mxu0 %v1290
        %1824 = vmatprep.subr.bf16.mxu0 0
        %1825 = vmatpush1.bf16.msra.mxu0 %v1293
        %1826 = vmatprep.subr.bf16.mxu0 0
        %1827 = vmatpush1.bf16.msra.mxu0 %v1296
        %1828 = vmatprep.subr.bf16.mxu0 0
        %1829 = vmatpush1.bf16.msra.mxu0 %v1299
        %1830 = vmatprep.subr.bf16.mxu0 0
        %1831 = vmatpush1.bf16.msra.mxu0 %v1302
        %1832 = vmatprep.subr.bf16.mxu0 0
        %1833 = vmatpush1.bf16.msra.mxu0 %v1305
        %1834 = vmatprep.subr.bf16.mxu0 0
        %1835 = vmatpush1.bf16.msra.mxu0 %v1308
        %1836 = vmatprep.subr.bf16.mxu0 0
        %1837 = vmatpush1.bf16.msra.mxu0 %v1311
        %1838 = vmatprep.subr.bf16.mxu0 0
        %1839 = vmatpush1.bf16.msra.mxu0 %v1314
        %1840 = vmatprep.subr.bf16.mxu0 0
        %1841 = vmatpush1.bf16.msra.mxu0 %v1317
        %1842 = vmatprep.mubr.bf16.mxu0 %v304
        %1843 = vmatmul.mubr.bf16.gmra.mrb[0].mxu0 %v303
        %v1844 = vpop.f32.mrb[0].mxu0
        %v1845 = vadd.f32 %v1805, %v1844
        %v1846 = vpop.f32.mrb[0].mxu0
        %v1847 = vpop.f32.mrb[0].mxu0
        %v1848 = vpop.f32.mrb[0].mxu0
        %1849 = vdwg.mxu0
        %1850 = vmatprep.subr.bf16.mxu0 0
        %1851 = vmatpush1.bf16.msra.mxu0 %v1320
        %1852 = vmatprep.subr.bf16.mxu0 0
        %1853 = vmatpush1.bf16.msra.mxu0 %v1323
        %1854 = vmatprep.subr.bf16.mxu0 0
        %1855 = vmatpush1.bf16.msra.mxu0 %v1326
        %1856 = vmatprep.subr.bf16.mxu0 0
        %1857 = vmatpush1.bf16.msra.mxu0 %v1329
        %1858 = vmatprep.subr.bf16.mxu0 0
        %1859 = vmatpush1.bf16.msra.mxu0 %v1332
        %1860 = vmatprep.subr.bf16.mxu0 0
        %1861 = vmatpush1.bf16.msra.mxu0 %v1335
        %1862 = vmatprep.subr.bf16.mxu0 0
        %1863 = vmatpush1.bf16.msra.mxu0 %v1338
        %1864 = vmatprep.subr.bf16.mxu0 0
        %1865 = vmatpush1.bf16.msra.mxu0 %v1341
        %1866 = vmatprep.subr.bf16.mxu0 0
        %1867 = vmatpush1.bf16.msra.mxu0 %v1344
        %1868 = vmatprep.subr.bf16.mxu0 0
        %1869 = vmatpush1.bf16.msra.mxu0 %v1347
        %1870 = vmatprep.subr.bf16.mxu0 0
        %1871 = vmatpush1.bf16.msra.mxu0 %v1350
        %1872 = vmatprep.subr.bf16.mxu0 0
        %1873 = vmatpush1.bf16.msra.mxu0 %v1353
        %1874 = vmatprep.subr.bf16.mxu0 0
        %1875 = vmatpush1.bf16.msra.mxu0 %v1356
        %1876 = vmatprep.subr.bf16.mxu0 0
        %1877 = vmatpush1.bf16.msra.mxu0 %v1359
        %1878 = vmatprep.subr.bf16.mxu0 0
        %1879 = vmatpush1.bf16.msra.mxu0 %v1362
        %1880 = vmatprep.subr.bf16.mxu0 0
        %1881 = vmatpush1.bf16.msra.mxu0 %v1365
        %1882 = vmatprep.mubr.bf16.mxu0 %v306
        %1883 = vmatmul.mubr.bf16.gmra.mrb[0].mxu0 %v305
        %v1884 = vpop.f32.mrb[0].mxu0
        %v1885 = vadd.f32 %v1845, %v1884
        %v1886 = vpop.f32.mrb[0].mxu0
        %v1887 = vpop.f32.mrb[0].mxu0
        %v1888 = vpop.f32.mrb[0].mxu0
        %1889 = vdwg.mxu0
        %1890 = vmatprep.subr.bf16.mxu0 0
        %1891 = vmatpush1.bf16.msra.mxu0 %v1368
        %1892 = vmatprep.subr.bf16.mxu0 0
        %1893 = vmatpush1.bf16.msra.mxu0 %v1371
        %1894 = vmatprep.subr.bf16.mxu0 0
        %1895 = vmatpush1.bf16.msra.mxu0 %v1374
        %1896 = vmatprep.subr.bf16.mxu0 0
        %1897 = vmatpush1.bf16.msra.mxu0 %v1377
        %1898 = vmatprep.subr.bf16.mxu0 0
        %1899 = vmatpush1.bf16.msra.mxu0 %v1380
        %1900 = vmatprep.subr.bf16.mxu0 0
        %1901 = vmatpush1.bf16.msra.mxu0 %v1383
        %1902 = vmatprep.subr.bf16.mxu0 0
        %1903 = vmatpush1.bf16.msra.mxu0 %v1386
        %1904 = vmatprep.subr.bf16.mxu0 0
        %1905 = vmatpush1.bf16.msra.mxu0 %v1389
        %1906 = vmatprep.subr.bf16.mxu0 0
        %1907 = vmatpush1.bf16.msra.mxu0 %v1392
        %1908 = vmatprep.subr.bf16.mxu0 0
        %1909 = vmatpush1.bf16.msra.mxu0 %v1395
        %1910 = vmatprep.subr.bf16.mxu0 0
        %1911 = vmatpush1.bf16.msra.mxu0 %v1398
        %1912 = vmatprep.subr.bf16.mxu0 0
        %1913 = vmatpush1.bf16.msra.mxu0 %v1401
        %1914 = vmatprep.subr.bf16.mxu0 0
        %1915 = vmatpush1.bf16.msra.mxu0 %v1404
        %1916 = vmatprep.subr.bf16.mxu0 0
        %1917 = vmatpush1.bf16.msra.mxu0 %v1407
        %1918 = vmatprep.subr.bf16.mxu0 0
        %1919 = vmatpush1.bf16.msra.mxu0 %v1410
        %1920 = vmatprep.subr.bf16.mxu0 0
        %1921 = vmatpush1.bf16.msra.mxu0 %v1413
        %1922 = vmatprep.mubr.bf16.mxu0 %v308
        %1923 = vmatmul.mubr.bf16.gmra.mrb[0].mxu0 %v307
        %v1924 = vpop.f32.mrb[0].mxu0
        %v1925 = vadd.f32 %v1885, %v1924
        %v1926 = vpop.f32.mrb[0].mxu0
        %v1927 = vpop.f32.mrb[0].mxu0
        %v1928 = vpop.f32.mrb[0].mxu0
        %1929 = vdwg.mxu0
        %v1930 = vmax.f32 %v1764, 0.0
        %v1931 = vmax.f32 %v1766, 0.0
        %v1932 = vmax.f32 %v1925, 0.0
        %v1933 = vpack.c.bf16 %v1930, %v1930
        %v1934 = vpack.c.bf16 %v1931, %v1931
        %v1935 = vpack.c.bf16 %v1932, %v1932
        %v1936 = vld [vmem:[%s3] sm:$0xf]
        %v1937 = vld [vmem:[%s3 + $0x4] sm:$0xf]
        %v1938 = vld [vmem:[%s3 + $0x8] sm:$0xf]
        %v1939 = vld [vmem:[%s3 + $0xc] sm:$0xf]
        %v1940 = vld [vmem:[%s3 + $0x10] sm:$0xf]
        %v1941 = vld [vmem:[%s3 + $0x14] sm:$0xf]
        %v1942 = vld [vmem:[%s3 + $0x18] sm:$0xf]
        %v1943 = vld [vmem:[%s3 + $0x1c] sm:$0xf]
        %v1944 = vld [vmem:[%s3 + $0x20] sm:$0xf]
        %v1945 = vld [vmem:[%s3 + $0x24] sm:$0xf]
        %v1946 = vld [vmem:[%s3 + $0x28] sm:$0xf]
        %v1947 = vld [vmem:[%s3 + $0x2c] sm:$0xf]
        %v1948 = vld [vmem:[%s3 + $0x30] sm:$0xf]
        %v1949 = vld [vmem:[%s3 + $0x34] sm:$0xf]
        %v1950 = vld [vmem:[%s3 + $0x38] sm:$0xf]
        %v1951 = vld [vmem:[%s3 + $0x3c] sm:$0xf]
        %v1952 = vld [vmem:[%s3 + $0x40] sm:$0xf]
        %v1953 = vld [vmem:[%s3 + $0x44] sm:$0xf]
        %v1954 = vld [vmem:[%s3 + $0x48] sm:$0xf]
        %v1955 = vld [vmem:[%s3 + $0x4c] sm:$0xf]
        %v1956 = vld [vmem:[%s3 + $0x50] sm:$0xf]
        %v1957 = vld [vmem:[%s3 + $0x54] sm:$0xf]
        %v1958 = vld [vmem:[%s3 + $0x58] sm:$0xf]
        %v1959 = vld [vmem:[%s3 + $0x5c] sm:$0xf]
        %v1960 = vld [vmem:[%s3 + $0x60] sm:$0xf]
        %v1961 = vld [vmem:[%s3 + $0x64] sm:$0xf]
        %v1962 = vld [vmem:[%s3 + $0x68] sm:$0xf]
        %v1963 = vld [vmem:[%s3 + $0x6c] sm:$0xf]
        %v1964 = vld [vmem:[%s3 + $0x70] sm:$0xf]
        %v1965 = vld [vmem:[%s3 + $0x74] sm:$0xf]
        %v1966 = vld [vmem:[%s3 + $0x78] sm:$0xf]
        %v1967 = vld [vmem:[%s3 + $0x7c] sm:$0xf]
        %v1968 = vld [vmem:[%s3 + $0x80] sm:$0xf]
        %v1969 = vld [vmem:[%s3 + $0x84] sm:$0xf]
        %v1970 = vld [vmem:[%s3 + $0x88] sm:$0xf]
        %v1971 = vld [vmem:[%s3 + $0x8c] sm:$0xf]
        %v1972 = vld [vmem:[%s3 + $0x90] sm:$0xf]
        %v1973 = vld [vmem:[%s3 + $0x94] sm:$0xf]
        %v1974 = vld [vmem:[%s3 + $0x98] sm:$0xf]
        %v1975 = vld [vmem:[%s3 + $0x9c] sm:$0xf]
        %v1976 = vld [vmem:[%s3 + $0xa0] sm:$0xf]
        %v1977 = vld [vmem:[%s3 + $0xa4] sm:$0xf]
        %v1978 = vld [vmem:[%s3 + $0xa8] sm:$0xf]
        %v1979 = vld [vmem:[%s3 + $0xac] sm:$0xf]
        %v1980 = vld [vmem:[%s3 + $0xb0] sm:$0xf]
        %v1981 = vld [vmem:[%s3 + $0xb4] sm:$0xf]
        %v1982 = vld [vmem:[%s3 + $0xb8] sm:$0xf]
        %v1983 = vld [vmem:[%s3 + $0xbc] sm:$0xf]
        %v1984 = vld [vmem:[%s4] sm:$0x1]
        %v1986 = vlaneseq
        %v1987 = vshrl.u32 %v1986, 7
        %v1988 = vsub.s32 0, %v1987
        %v1989 = vrot.slane %v1984, %v1988
        %v2039 = vunpack.c.l.b16 %v1936
        %v2040 = vunpack.c.l.b16 %v1937
        %v2041 = vunpack.c.l.b16 %v1938
        %v2042 = vunpack.c.l.b16 %v1939
        %v2043 = vunpack.c.l.b16 %v1940
        %v2044 = vunpack.c.l.b16 %v1941
        %v2045 = vunpack.c.l.b16 %v1942
        %v2046 = vunpack.c.l.b16 %v1943
        %v2047 = vunpack.c.l.b16 %v1944
        %v2048 = vunpack.c.l.b16 %v1945
        %v2049 = vunpack.c.l.b16 %v1946
        %v2050 = vunpack.c.l.b16 %v1947
        %v2051 = vunpack.c.l.b16 %v1948
        %v2052 = vunpack.c.l.b16 %v1949
        %v2053 = vunpack.c.l.b16 %v1950
        %v2054 = vunpack.c.l.b16 %v1951
        %v2055 = vunpack.c.l.b16 %v1952
        %v2056 = vunpack.c.l.b16 %v1953
        %v2057 = vunpack.c.l.b16 %v1954
        %v2058 = vunpack.c.l.b16 %v1955
        %v2059 = vunpack.c.l.b16 %v1956
        %v2060 = vunpack.c.l.b16 %v1957
        %v2061 = vunpack.c.l.b16 %v1958
        %v2062 = vunpack.c.l.b16 %v1959
        %v2063 = vunpack.c.l.b16 %v1960
        %v2064 = vunpack.c.l.b16 %v1961
        %v2065 = vunpack.c.l.b16 %v1962
        %v2066 = vunpack.c.l.b16 %v1963
        %v2067 = vunpack.c.l.b16 %v1964
        %v2068 = vunpack.c.l.b16 %v1965
        %v2069 = vunpack.c.l.b16 %v1966
        %v2070 = vunpack.c.l.b16 %v1967
        %v2071 = vunpack.c.l.b16 %v1968
        %v2072 = vunpack.c.l.b16 %v1969
        %v2073 = vunpack.c.l.b16 %v1970
        %v2074 = vunpack.c.l.b16 %v1971
        %v2075 = vunpack.c.l.b16 %v1972
        %v2076 = vunpack.c.l.b16 %v1973
        %v2077 = vunpack.c.l.b16 %v1974
        %v2078 = vunpack.c.l.b16 %v1975
        %v2079 = vunpack.c.l.b16 %v1976
        %v2080 = vunpack.c.l.b16 %v1977
        %v2081 = vunpack.c.l.b16 %v1978
        %v2082 = vunpack.c.l.b16 %v1979
        %v2083 = vunpack.c.l.b16 %v1980
        %v2084 = vunpack.c.l.b16 %v1981
        %v2085 = vunpack.c.l.b16 %v1982
        %v2086 = vunpack.c.l.b16 %v1983
        %v2087 = vpack.c.b16 %v2040, %v2039
        %v2088 = vpack.c.b16 %v2042, %v2041
        %v2089 = vpack.c.b16 %v2044, %v2043
        %v2090 = vpack.c.b16 %v2046, %v2045
        %v2091 = vpack.c.b16 %v2048, %v2047
        %v2092 = vpack.c.b16 %v2050, %v2049
        %v2093 = vpack.c.b16 %v2052, %v2051
        %v2094 = vpack.c.b16 %v2054, %v2053
        %v2095 = vpack.c.b16 %v2056, %v2055
        %v2096 = vpack.c.b16 %v2058, %v2057
        %v2097 = vpack.c.b16 %v2060, %v2059
        %v2098 = vpack.c.b16 %v2062, %v2061
        %v2099 = vpack.c.b16 %v2064, %v2063
        %v2100 = vpack.c.b16 %v2066, %v2065
        %v2101 = vpack.c.b16 %v2068, %v2067
        %v2102 = vpack.c.b16 %v2070, %v2069
        %v2103 = vpack.c.b16 %v2072, %v2071
        %v2104 = vpack.c.b16 %v2074, %v2073
        %v2105 = vpack.c.b16 %v2076, %v2075
        %v2106 = vpack.c.b16 %v2078, %v2077
        %v2107 = vpack.c.b16 %v2080, %v2079
        %v2108 = vpack.c.b16 %v2082, %v2081
        %v2109 = vpack.c.b16 %v2084, %v2083
        %v2110 = vpack.c.b16 %v2086, %v2085
        %2135 = vmatprep.subr.bf16.mxu0 0
        %2136 = vmatpush1.bf16.msra.mxu0 %v2087
        %2137 = vmatprep.subr.bf16.mxu0 0
        %2138 = vmatpush1.bf16.msra.mxu0 %v2088
        %2139 = vmatprep.subr.bf16.mxu0 0
        %2140 = vmatpush1.bf16.msra.mxu0 %v2089
        %2141 = vmatprep.subr.bf16.mxu0 0
        %2142 = vmatpush1.bf16.msra.mxu0 %v2090
        %2143 = vmatprep.subr.bf16.mxu0 0
        %2144 = vmatpush1.bf16.msra.mxu0 %v2091
        %2145 = vmatprep.subr.bf16.mxu0 0
        %2146 = vmatpush1.bf16.msra.mxu0 %v2092
        %2147 = vmatprep.subr.bf16.mxu0 0
        %2148 = vmatpush1.bf16.msra.mxu0 %v2093
        %2149 = vmatprep.subr.bf16.mxu0 0
        %2150 = vmatpush1.bf16.msra.mxu0 %v2094
        %2151 = vmatprep.subr.bf16.mxu0 0
        %2152 = vmatpush1.bf16.msra.mxu0 %v2095
        %2153 = vmatprep.subr.bf16.mxu0 0
        %2154 = vmatpush1.bf16.msra.mxu0 %v2096
        %2155 = vmatprep.subr.bf16.mxu0 0
        %2156 = vmatpush1.bf16.msra.mxu0 %v2097
        %2157 = vmatprep.subr.bf16.mxu0 0
        %2158 = vmatpush1.bf16.msra.mxu0 %v2098
        %2159 = vmatprep.subr.bf16.mxu0 0
        %2160 = vmatpush1.bf16.msra.mxu0 %v2099
        %2161 = vmatprep.subr.bf16.mxu0 0
        %2162 = vmatpush1.bf16.msra.mxu0 %v2100
        %2163 = vmatprep.subr.bf16.mxu0 0
        %2164 = vmatpush1.bf16.msra.mxu0 %v2101
        %2165 = vmatprep.subr.bf16.mxu0 0
        %2166 = vmatpush1.bf16.msra.mxu0 %v2102
        %2167 = vmatprep.mubr.bf16.mxu0 %v1934
        %2168 = vmatmul.mubr.bf16.gmra.mrb[0].mxu0 %v1933
        %v2169 = vpop.f32.mrb[0].mxu0
        %v2170 = vadd.f32 %v1989, %v2169
        %v2171 = vpop.f32.mrb[0].mxu0
        %v2172 = vpop.f32.mrb[0].mxu0
        %v2173 = vpop.f32.mrb[0].mxu0
        %2174 = vdwg.mxu0
        %2175 = vmatprep.subr.bf16.mxu0 0
        %2176 = vmatpush1.bf16.msra.mxu0 %v2103
        %2177 = vmatprep.subr.bf16.mxu0 0
        %2178 = vmatpush1.bf16.msra.mxu0 %v2104
        %2179 = vmatprep.subr.bf16.mxu0 0
        %2180 = vmatpush1.bf16.msra.mxu0 %v2105
        %2181 = vmatprep.subr.bf16.mxu0 0
        %2182 = vmatpush1.bf16.msra.mxu0 %v2106
        %2183 = vmatprep.subr.bf16.mxu0 0
        %2184 = vmatpush1.bf16.msra.mxu0 %v2107
        %2185 = vmatprep.subr.bf16.mxu0 0
        %2186 = vmatpush1.bf16.msra.mxu0 %v2108
        %2187 = vmatprep.subr.bf16.mxu0 0
        %2188 = vmatpush1.bf16.msra.mxu0 %v2109
        %2189 = vmatprep.subr.bf16.mxu0 0
        %2190 = vmatpush1.bf16.msra.mxu0 %v2110
        %2191 = vmatprep.subr.bf16.mxu0 0
        %2192 = vmatpush1.bf16.msra.mxu0 0
        %2193 = vmatprep.subr.bf16.mxu0 0
        %2194 = vmatpush1.bf16.msra.mxu0 0
        %2195 = vmatprep.subr.bf16.mxu0 0
        %2196 = vmatpush1.bf16.msra.mxu0 0
        %2197 = vmatprep.subr.bf16.mxu0 0
        %2198 = vmatpush1.bf16.msra.mxu0 0
        %2199 = vmatprep.subr.bf16.mxu0 0
        %2200 = vmatpush1.bf16.msra.mxu0 0
        %2201 = vmatprep.subr.bf16.mxu0 0
        %2202 = vmatpush1.bf16.msra.mxu0 0
        %2203 = vmatprep.subr.bf16.mxu0 0
        %2204 = vmatpush1.bf16.msra.mxu0 0
        %2205 = vmatprep.subr.bf16.mxu0 0
        %2206 = vmatpush1.bf16.msra.mxu0 0
        %2207 = vmatprep.mubr.bf16.mxu0 0
        %2208 = vmatmul.mubr.bf16.gmra.mrb[0].mxu0 %v1935
        %v2209 = vpop.f32.mrb[0].mxu0
        %v2210 = vadd.f32 %v2170, %v2209
        %v2211 = vpop.f32.mrb[0].mxu0
        %v2212 = vpop.f32.mrb[0].mxu0
        %v2213 = vpop.f32.mrb[0].mxu0
        %2214 = vdwg.mxu0
        %v2215 = vmax.f32 %v2210, 0.0
        %v2216 = vpack.c.bf16 %v2215, %v2215
        %v2217 = vld [vmem:[%s5] sm:$0xf]
        %v2218 = vld [vmem:[%s5 + $0x4] sm:$0xf]
        %v2219 = vld [vmem:[%s5 + $0x8] sm:$0xf]
        %v2220 = vld [vmem:[%s5 + $0xc] sm:$0xf]
        %v2221 = vld [vmem:[%s5 + $0x10] sm:$0xf]
        %v2222 = vld [vmem:[%s5 + $0x14] sm:$0xf]
        %v2223 = vld [vmem:[%s5 + $0x18] sm:$0xf]
        %v2224 = vld [vmem:[%s5 + $0x1c] sm:$0xf]
        %v2225 = vld [vmem:[%s5 + $0x20] sm:$0xf]
        %v2226 = vld [vmem:[%s5 + $0x24] sm:$0xf]
        %v2227 = vld [vmem:[%s5 + $0x28] sm:$0xf]
        %v2228 = vld [vmem:[%s5 + $0x2c] sm:$0xf]
        %v2229 = vld [vmem:[%s5 + $0x30] sm:$0xf]
        %v2230 = vld [vmem:[%s5 + $0x34] sm:$0xf]
        %v2231 = vld [vmem:[%s5 + $0x38] sm:$0xf]
        %v2232 = vld [vmem:[%s5 + $0x3c] sm:$0xf]
        %v2233 = vld [vmem:[%s6] sm:$0x1]
        %v2235 = vlaneseq
        %v2236 = vshrl.u32 %v2235, 7
        %v2237 = vsub.s32 0, %v2236
        %v2238 = vrot.slane %v2233, %v2237
        %v2256 = vunpack.c.l.b16 %v2217
        %v2257 = vunpack.c.l.b16 %v2218
        %v2258 = vunpack.c.l.b16 %v2219
        %v2259 = vunpack.c.l.b16 %v2220
        %v2260 = vunpack.c.l.b16 %v2221
        %v2261 = vunpack.c.l.b16 %v2222
        %v2262 = vunpack.c.l.b16 %v2223
        %v2263 = vunpack.c.l.b16 %v2224
        %v2264 = vunpack.c.l.b16 %v2225
        %v2265 = vunpack.c.l.b16 %v2226
        %v2266 = vunpack.c.l.b16 %v2227
        %v2267 = vunpack.c.l.b16 %v2228
        %v2268 = vunpack.c.l.b16 %v2229
        %v2269 = vunpack.c.l.b16 %v2230
        %v2270 = vunpack.c.l.b16 %v2231
        %v2271 = vunpack.c.l.b16 %v2232
        %v2272 = vpack.c.b16 %v2257, %v2256
        %v2273 = vpack.c.b16 %v2259, %v2258
        %v2274 = vpack.c.b16 %v2261, %v2260
        %v2275 = vpack.c.b16 %v2263, %v2262
        %v2276 = vpack.c.b16 %v2265, %v2264
        %v2277 = vpack.c.b16 %v2267, %v2266
        %v2278 = vpack.c.b16 %v2269, %v2268
        %v2279 = vpack.c.b16 %v2271, %v2270
        %2288 = vmatprep.subr.bf16.mxu0 0
        %2289 = vmatpush1.bf16.msra.mxu0 %v2272
        %2290 = vmatprep.subr.bf16.mxu0 0
        %2291 = vmatpush1.bf16.msra.mxu0 %v2273
        %2292 = vmatprep.subr.bf16.mxu0 0
        %2293 = vmatpush1.bf16.msra.mxu0 %v2274
        %2294 = vmatprep.subr.bf16.mxu0 0
        %2295 = vmatpush1.bf16.msra.mxu0 %v2275
        %2296 = vmatprep.subr.bf16.mxu0 0
        %2297 = vmatpush1.bf16.msra.mxu0 %v2276
        %2298 = vmatprep.subr.bf16.mxu0 0
        %2299 = vmatpush1.bf16.msra.mxu0 %v2277
        %2300 = vmatprep.subr.bf16.mxu0 0
        %2301 = vmatpush1.bf16.msra.mxu0 %v2278
        %2302 = vmatprep.subr.bf16.mxu0 0
        %2303 = vmatpush1.bf16.msra.mxu0 %v2279
        %2304 = vmatprep.subr.bf16.mxu0 0
        %2305 = vmatpush1.bf16.msra.mxu0 0
        %2306 = vmatprep.subr.bf16.mxu0 0
        %2307 = vmatpush1.bf16.msra.mxu0 0
        %2308 = vmatprep.subr.bf16.mxu0 0
        %2309 = vmatpush1.bf16.msra.mxu0 0
        %2310 = vmatprep.subr.bf16.mxu0 0
        %2311 = vmatpush1.bf16.msra.mxu0 0
        %2312 = vmatprep.subr.bf16.mxu0 0
        %2313 = vmatpush1.bf16.msra.mxu0 0
        %2314 = vmatprep.subr.bf16.mxu0 0
        %2315 = vmatpush1.bf16.msra.mxu0 0
        %2316 = vmatprep.subr.bf16.mxu0 0
        %2317 = vmatpush1.bf16.msra.mxu0 0
        %2318 = vmatprep.subr.bf16.mxu0 0
        %2319 = vmatpush1.bf16.msra.mxu0 0
        %2320 = vmatprep.mubr.bf16.mxu0 0
        %2321 = vmatmul.mubr.bf16.gmra.mrb[0].mxu0 %v2216
        %v2322 = vpop.f32.mrb[0].mxu0
        %v2323 = vadd.f32 %v2238, %v2322
        %v2324 = vpop.f32.mrb[0].mxu0
        %v2325 = vpop.f32.mrb[0].mxu0
        %v2326 = vpop.f32.mrb[0].mxu0
        %2327 = vdwg.mxu0
        %v2328 = vpack.c.bf16 %v2323, %v2323
        %2329 = vst [vmem:[%s286] sm:$0xf] %v2328
        %s2330 = sand.u32 %s182, 1
        %s2331 = scalar_lea.sflag [#allocation4], %s2330
        %s2332 = sand.u32 %s182, 1
        %s2333 = smul.addr %s2332, 4
        %s2334 = scalar_lea.vmem [#allocation5], %s2333
        // Predicated region
        $region53: #{net_forward.1} parent=47 // pred_check
          %p2335 = pneg %p192
        $region54: #{net_forward.1} parent=47 // pred_check_branch
          %2337 = sbr.rel (%p2335) target = $region56
        $region55: #{net_forward.1} parent=47 // pred_region
          %s2339 = ssub.s32 64, 64
          %2340 = vsyncadd %s2331, %s2339
          %s2341 = smul.addr %s22, 64
          %s2342 = scalar_lea.hbm %s7, %s2341
          %s2344 = sshll.u32 %s2334, 4
          %s2345 = int_to_ptr.vmem [resolvable:$true] %s2344
          %2347 = dma.vmem_to_hbm [thread:$0]  %s2345, 64, %s2342, %s2331
        $region56: #{net_forward.1} parent=47 // pred_fallthru
          _
      $region48: #{net_forward.1} parent=5 // pred_fallthru
        _
      %p2348 = scmp.le.s32.totalorder 2, %s17
      // Predicated region
      $region57: #{net_forward.1} parent=5 // pred_check
        %p2349 = pneg %p2348
      $region58: #{net_forward.1} parent=5 // pred_check_branch
        %2351 = sbr.rel (%p2349) target = $region60
      $region59: #{net_forward.1} parent=5 // pred_region
        %s2352 = ssub.s32 %s17, 2
        // Predicated region
        $region61: #{net_forward.1} parent=59 // pred_check
          %p2353 = pneg %p198
        $region62: #{net_forward.1} parent=59 // pred_check_branch
          %2355 = sbr.rel (%p2353) target = $region64
        $region63: #{net_forward.1} parent=59 // pred_region
          %s2356 = sand.u32 %s183, 1
          %s2357 = scalar_lea.sflag [#allocation4], %s2356
          %s2358 = sand.u32 %s183, 1
          %s2359 = smul.addr %s2358, 4
          %s2360 = scalar_lea.vmem [#allocation5], %s2359
          %2361 = dma.done %s2357, 64
        $region64: #{net_forward.1} parent=59 // pred_fallthru
          _
      $region60: #{net_forward.1} parent=5 // pred_fallthru
        _
    $region6: #{net_forward.1} parent=1 // loop_footer
      %s21 = sadd.s32 1, %s17
    $region7: #{net_forward.1} parent=1 // loop_footer_branch
      %16 = sbr.rel target = $region3
    $region8: #{net_forward.1} parent=1 // loop_exit
      _
    %2362 = vsyncpa [#allocation3], 1
    %s2363 = scalar_lea.sflag [#allocation3], 1
    %2364 = vsyncpa %s2363, 1
    %2365 = vsyncpa [#allocation4], 1
    %s2366 = scalar_lea.sflag [#allocation4], 1
    %2367 = vsyncpa %s2366, 1

</llo_original>
